<compile_context>
chip_gen: v5e
topology: v5e:2x2
jax: 0.10.0
libtpu: 0.0.40
codegen_flags: <defaults>
</compile_context>

<pallas_src>
import functools
import math

import jax
import jax.numpy as jnp
import numpy as np
from jax.experimental import pallas as pl
from jax.experimental.pallas import tpu as pltpu


# ------------------------------ fused kernel --------------------------------

def _layernorm(x, g, b, eps):
    mean = jnp.mean(x, axis=-1, keepdims=True)
    var = jnp.mean(jnp.square(x - mean), axis=-1, keepdims=True)
    return (x - mean) * jax.lax.rsqrt(var + eps) * g + b


def _bert_kernel(x_emb_ref, mask_ref,
                 emb_g_ref, emb_b_ref,
                 w_qkv_ref, b_qkv_ref,
                 w_o_ref, b_o_ref,
                 ln1_g_ref, ln1_b_ref,
                 w_i_ref, b_i_ref,
                 w_f_ref, b_f_ref,
                 ln2_g_ref, ln2_b_ref,
                 pool_w_ref, pool_b_ref,
                 fc_w_ref, fc_b_ref,
                 probs_ref,
                 x_vmem,
                 *, B, S, num_heads, head_dim, eps):
    l = pl.program_id(0)
    H = num_heads * head_dim

    # --- grid step 0: embedding LayerNorm (LN-only, no zeros residual stream) ---
    @pl.when(l == 0)
    def _():
        x0 = x_emb_ref[...].astype(jnp.float32)
        x_vmem[...] = _layernorm(x0, emb_g_ref[...], emb_b_ref[...], eps)

    x = x_vmem[...]                                    # (B*S, H) f32, VMEM-resident
    mask = mask_ref[...]                               # (B, S) additive mask

    # --- fused QKV projection: one bf16 MXU matmul, f32 accumulation ---
    qkv = jnp.dot(x.astype(jnp.bfloat16), w_qkv_ref[0],
                  preferred_element_type=jnp.float32) + b_qkv_ref[0]
    q = qkv[:, 0 * H:1 * H]        # 1/sqrt(head_dim) already folded into W_q / b_q
    k = qkv[:, 1 * H:2 * H]
    v = qkv[:, 2 * H:3 * H]

    # --- multi-head self-attention, all heads in this single invocation ---
    ctx_rows = []
    for b in range(B):                                  # static, unrolled
        r0, r1 = b * S, (b + 1) * S
        mb = mask[b:b + 1, :]                           # (1, S) -> broadcast over query rows
        head_ctx = []
        for h in range(num_heads):                      # static, unrolled
            c0, c1 = h * head_dim, (h + 1) * head_dim
            qh = q[r0:r1, c0:c1]
            kh = k[r0:r1, c0:c1]
            vh = v[r0:r1, c0:c1]
            # contract last dims directly; no explicit k.T
            s = jax.lax.dot_general(qh, kh, (((1,), (1,)), ((), ())),
                                    preferred_element_type=jnp.float32)
            s = s + mb
            m = jnp.max(s, axis=-1, keepdims=True)
            p = jnp.exp(s - m)
            p = p * pl.reciprocal(jnp.sum(p, axis=-1, keepdims=True), approx=True)
            head_ctx.append(jnp.dot(p, vh, preferred_element_type=jnp.float32))
        ctx_rows.append(jnp.concatenate(head_ctx, axis=1))          # (S, H)
    ctx = jnp.concatenate(ctx_rows, axis=0)                         # (B*S, H)

    # --- attention output projection + residual + LayerNorm ---
    attn = jnp.dot(ctx.astype(jnp.bfloat16), w_o_ref[0],
                   preferred_element_type=jnp.float32) + b_o_ref[0]
    x = _layernorm(attn + x, ln1_g_ref[0], ln1_b_ref[0], eps)

    # --- feed-forward + residual + LayerNorm ---
    h1 = jnp.dot(x.astype(jnp.bfloat16), w_i_ref[0],
                 preferred_element_type=jnp.float32) + b_i_ref[0]
    # TODO(synk): bert-base uses exact erf GELU; tanh approximation used here.
    h1 = jax.nn.gelu(h1, approximate=True)
    h2 = jnp.dot(h1.astype(jnp.bfloat16), w_f_ref[0],
                 preferred_element_type=jnp.float32) + b_f_ref[0]
    x = _layernorm(h2 + x, ln2_g_ref[0], ln2_b_ref[0], eps)

    x_vmem[...] = x

    # --- last layer: pooler (tanh on CLS) + classifier + softmax(dim=1) ---
    @pl.when(l == pl.num_programs(0) - 1)
    def _():
        cls = jnp.concatenate([x[b * S:b * S + 1, :] for b in range(B)], axis=0)   # (B, H)
        pooled = jnp.tanh(jnp.dot(cls, pool_w_ref[...],
                                  preferred_element_type=jnp.float32) + pool_b_ref[...])
        logits = jnp.dot(pooled, fc_w_ref[...],
                         preferred_element_type=jnp.float32) + fc_b_ref[...]
        m = jnp.max(logits, axis=-1, keepdims=True)
        e = jnp.exp(logits - m)
        # exact division here so output probabilities sum to 1 to f32 precision
        probs_ref[...] = (e / jnp.sum(e, axis=-1, keepdims=True)).astype(probs_ref.dtype)


# ------------------------------ model glue ---------------------------------

def init_params(key, cfg):
    H, I = cfg["hidden"], cfg["intermediate"]
    V, P, T, L = cfg["vocab"], cfg["max_pos"], cfg["type_vocab"], cfg["layers"]
    keys = jax.random.split(key, 8 + L)

    def w(k, shape):
        return jax.random.normal(k, shape, jnp.float32) * 0.02

    params = {
        "word_emb": w(keys[0], (V, H)),
        "pos_emb": w(keys[1], (P, H)),
        "type_emb": w(keys[2], (T, H)),
        "emb_ln_g": jnp.ones((H,), jnp.float32),
        "emb_ln_b": jnp.zeros((H,), jnp.float32),
        "pool_w": w(keys[3], (H, H)),
        "pool_b": jnp.zeros((H,), jnp.float32),
        "fc_w": w(keys[4], (H, 2)),
        "fc_b": jnp.zeros((2,), jnp.float32),
        "layers": [],
    }
    for l in range(L):
        lk = jax.random.split(keys[8 + l], 6)
        params["layers"].append({
            "q_w": w(lk[0], (H, H)), "q_b": jnp.zeros((H,), jnp.float32),
            "k_w": w(lk[1], (H, H)), "k_b": jnp.zeros((H,), jnp.float32),
            "v_w": w(lk[2], (H, H)), "v_b": jnp.zeros((H,), jnp.float32),
            "o_w": w(lk[3], (H, H)), "o_b": jnp.zeros((H,), jnp.float32),
            "ln1_g": jnp.ones((H,), jnp.float32), "ln1_b": jnp.zeros((H,), jnp.float32),
            "i_w": w(lk[4], (H, I)), "i_b": jnp.zeros((I,), jnp.float32),
            "f_w": w(lk[5], (I, H)), "f_b": jnp.zeros((H,), jnp.float32),
            "ln2_g": jnp.ones((H,), jnp.float32), "ln2_b": jnp.zeros((H,), jnp.float32),
        })
    return params


def _stack(layers, name):
    return jnp.stack([lyr[name] for lyr in layers], axis=0)


def model_forward(params, token_ids, attention_mask, cfg):
    """Equivalent of Model.forward(tokenized_text, attention_mask)."""
    B, S = token_ids.shape
    H, nH, I, L = cfg["hidden"], cfg["heads"], cfg["intermediate"], cfg["layers"]
    Dh = H // nH
    scale = 1.0 / math.sqrt(Dh)

    # --- BERT embeddings (gather glue stays in plain JAX) ---
    emb = (jnp.take(params["word_emb"], token_ids, axis=0)
           + params["pos_emb"][None, :S, :]
           + params["type_emb"][0][None, None, :])           # token_type_ids = 0
    x_emb = emb.reshape(B * S, H).astype(jnp.float32)

    # extended attention mask: (B, S) additive
    mask_add = (1.0 - attention_mask.astype(jnp.float32)) * -10000.0

    # --- stack per-layer weights to (L, ...) so a single pallas_call streams them ---
    layers = params["layers"]
    w_qkv = jnp.stack([
        jnp.concatenate([lyr["q_w"] * scale, lyr["k_w"], lyr["v_w"]], axis=1)
        for lyr in layers], axis=0).astype(jnp.bfloat16)                  # (L, H, 3H)
    b_qkv = jnp.stack([
        jnp.concatenate([lyr["q_b"] * scale, lyr["k_b"], lyr["v_b"]])[None, :]
        for lyr in layers], axis=0)                                       # (L, 1, 3H)
    w_o = _stack(layers, "o_w").astype(jnp.bfloat16)                      # (L, H, H)
    b_o = _stack(layers, "o_b")[:, None, :]
    ln1_g = _stack(layers, "ln1_g")[:, None, :]
    ln1_b = _stack(layers, "ln1_b")[:, None, :]
    w_i = _stack(layers, "i_w").astype(jnp.bfloat16)                      # (L, H, I)
    b_i = _stack(layers, "i_b")[:, None, :]
    w_f = _stack(layers, "f_w").astype(jnp.bfloat16)                      # (L, I, H)
    b_f = _stack(layers, "f_b")[:, None, :]
    ln2_g = _stack(layers, "ln2_g")[:, None, :]
    ln2_b = _stack(layers, "ln2_b")[:, None, :]

    def const_spec(*shape):
        return pl.BlockSpec(shape, lambda l, _n=len(shape): (0,) * _n)

    def per_layer(*shape):
        return pl.BlockSpec((1,) + shape, lambda l: (l, 0, 0))

    kernel = functools.partial(_bert_kernel, B=B, S=S, num_heads=nH,
                               head_dim=Dh, eps=1e-12)

    return pl.pallas_call(
        kernel,
        out_shape=jax.ShapeDtypeStruct((B, 2), jnp.float32),
        grid=(L,),
        in_specs=[
            const_spec(B * S, H),        # x_emb (pre-LN embeddings)
            const_spec(B, S),            # additive mask
            const_spec(1, H),            # emb_ln_g
            const_spec(1, H),            # emb_ln_b
            per_layer(H, 3 * H),         # w_qkv
            per_layer(1, 3 * H),         # b_qkv
            per_layer(H, H),             # w_o
            per_layer(1, H),             # b_o
            per_layer(1, H),             # ln1_g
            per_layer(1, H),             # ln1_b
            per_layer(H, I),             # w_i
            per_layer(1, I),             # b_i
            per_layer(I, H),             # w_f
            per_layer(1, H),             # b_f
            per_layer(1, H),             # ln2_g
            per_layer(1, H),             # ln2_b
            const_spec(H, H),            # pool_w
            const_spec(1, H),            # pool_b
            const_spec(H, 2),            # fc_w
            const_spec(1, 2),            # fc_b
        ],
        out_specs=pl.BlockSpec((B, 2), lambda l: (0, 0)),
        scratch_shapes=[pltpu.VMEM((B * S, H), jnp.float32)],   # resident activations
        compiler_params=pltpu.CompilerParams(
            dimension_semantics=("arbitrary",)),                # layers are sequential
    )(x_emb, mask_add,
      params["emb_ln_g"].reshape(1, H), params["emb_ln_b"].reshape(1, H),
      w_qkv, b_qkv, w_o, b_o, ln1_g, ln1_b,
      w_i, b_i, w_f, b_f, ln2_g, ln2_b,
      params["pool_w"], params["pool_b"].reshape(1, H),
      params["fc_w"], params["fc_b"].reshape(1, 2))


# --------------------------------- main -------------------------------------

if __name__ == "__main__":
    cfg = dict(vocab=100, hidden=32, intermediate=64, heads=2, layers=2,
               max_pos=16, type_vocab=2)
    B, S = 2, 8                                # small batchSize, seq len

    key = jax.random.PRNGKey(0)
    pkey, tkey = jax.random.split(key)
    params = init_params(pkey, cfg)

    token_ids = jax.random.randint(tkey, (B, S), 0, cfg["vocab"], dtype=jnp.int32)
    attention_mask = jnp.ones((B, S), dtype=jnp.int32)

    probs = model_forward(params, token_ids, attention_mask, cfg)
    probs = jax.block_until_ready(probs)

    assert probs.shape == (B, 2)
    assert np.allclose(np.asarray(probs).sum(axis=1), 1.0, atol=1e-5)
    print("KERNEL_OK")
</pallas_src>

<mosaic_0001>
module attributes {stable_mosaic.version = 11 : i64} {
  func.func @_bert_kernel(%arg0: i32, %arg1: memref<16x32xf32, #tpu.memory_space<vmem>>, %arg2: memref<2x8xf32, #tpu.memory_space<vmem>>, %arg3: memref<1x32xf32, #tpu.memory_space<vmem>>, %arg4: memref<1x32xf32, #tpu.memory_space<vmem>>, %arg5: memref<1x32x96xbf16, #tpu.memory_space<vmem>>, %arg6: memref<1x1x96xf32, #tpu.memory_space<vmem>>, %arg7: memref<1x32x32xbf16, #tpu.memory_space<vmem>>, %arg8: memref<1x1x32xf32, #tpu.memory_space<vmem>>, %arg9: memref<1x1x32xf32, #tpu.memory_space<vmem>>, %arg10: memref<1x1x32xf32, #tpu.memory_space<vmem>>, %arg11: memref<1x32x64xbf16, #tpu.memory_space<vmem>>, %arg12: memref<1x1x64xf32, #tpu.memory_space<vmem>>, %arg13: memref<1x64x32xbf16, #tpu.memory_space<vmem>>, %arg14: memref<1x1x32xf32, #tpu.memory_space<vmem>>, %arg15: memref<1x1x32xf32, #tpu.memory_space<vmem>>, %arg16: memref<1x1x32xf32, #tpu.memory_space<vmem>>, %arg17: memref<32x32xf32, #tpu.memory_space<vmem>>, %arg18: memref<1x32xf32, #tpu.memory_space<vmem>>, %arg19: memref<32x2xf32, #tpu.memory_space<vmem>>, %arg20: memref<1x2xf32, #tpu.memory_space<vmem>>, %arg21: memref<2x2xf32, #tpu.memory_space<vmem>>, %arg22: memref<16x32xf32, #tpu.memory_space<vmem>>) attributes {dimension_semantics = [#tpu.dimension_semantics<arbitrary>], iteration_bounds = array<i64: 2>, scalar_prefetch = 0 : i64, scratch_operands = 1 : i64, tpu.core_type = #tpu.core_type<tc>, window_params = [{pipeline_mode = #tpu.pipeline_mode<synchronous>, transform_indices = @transform_0, window_bounds = array<i64: 16, 32>}, {pipeline_mode = #tpu.pipeline_mode<synchronous>, transform_indices = @transform_1, window_bounds = array<i64: 2, 8>}, {pipeline_mode = #tpu.pipeline_mode<synchronous>, transform_indices = @transform_2, window_bounds = array<i64: 1, 32>}, {pipeline_mode = #tpu.pipeline_mode<synchronous>, transform_indices = @transform_3, window_bounds = array<i64: 1, 32>}, {transform_indices = @transform_4, window_bounds = array<i64: 1, 32, 96>}, {transform_indices = @transform_5, window_bounds = array<i64: 1, 1, 96>}, {transform_indices = @transform_6, window_bounds = array<i64: 1, 32, 32>}, {transform_indices = @transform_7, window_bounds = array<i64: 1, 1, 32>}, {transform_indices = @transform_8, window_bounds = array<i64: 1, 1, 32>}, {transform_indices = @transform_9, window_bounds = array<i64: 1, 1, 32>}, {transform_indices = @transform_10, window_bounds = array<i64: 1, 32, 64>}, {transform_indices = @transform_11, window_bounds = array<i64: 1, 1, 64>}, {transform_indices = @transform_12, window_bounds = array<i64: 1, 64, 32>}, {transform_indices = @transform_13, window_bounds = array<i64: 1, 1, 32>}, {transform_indices = @transform_14, window_bounds = array<i64: 1, 1, 32>}, {transform_indices = @transform_15, window_bounds = array<i64: 1, 1, 32>}, {pipeline_mode = #tpu.pipeline_mode<synchronous>, transform_indices = @transform_16, window_bounds = array<i64: 32, 32>}, {pipeline_mode = #tpu.pipeline_mode<synchronous>, transform_indices = @transform_17, window_bounds = array<i64: 1, 32>}, {pipeline_mode = #tpu.pipeline_mode<synchronous>, transform_indices = @transform_18, window_bounds = array<i64: 32, 2>}, {pipeline_mode = #tpu.pipeline_mode<synchronous>, transform_indices = @transform_19, window_bounds = array<i64: 1, 2>}, {pipeline_mode = #tpu.pipeline_mode<synchronous>, transform_indices = @transform_20, window_bounds = array<i64: 2, 2>}]} {
    %c0_i32 = arith.constant 0 : i32
    %0 = arith.cmpi eq, %arg0, %c0_i32 : i32
    %1 = arith.extui %0 : i1 to i32
    %c0_i32_0 = arith.constant 0 : i32
    %2 = arith.cmpi ne, %1, %c0_i32_0 : i32
    scf.if %2 {
      %c0_76 = arith.constant 0 : index
      %c0_77 = arith.constant 0 : index
      %184 = vector.load %arg1[%c0_76, %c0_77] : memref<16x32xf32, #tpu.memory_space<vmem>>, vector<16x32xf32>
      %c0_78 = arith.constant 0 : index
      %c0_79 = arith.constant 0 : index
      %185 = vector.load %arg3[%c0_78, %c0_79] : memref<1x32xf32, #tpu.memory_space<vmem>>, vector<1x32xf32>
      %c0_80 = arith.constant 0 : index
      %c0_81 = arith.constant 0 : index
      %186 = vector.load %arg4[%c0_80, %c0_81] : memref<1x32xf32, #tpu.memory_space<vmem>>, vector<1x32xf32>
      %cst_82 = arith.constant dense<0.000000e+00> : vector<16xf32>
      %187 = vector.multi_reduction <add>, %184, %cst_82 [1] : vector<16x32xf32> to vector<16xf32>
      %188 = vector.shape_cast %187 : vector<16xf32> to vector<16x1xf32>
      %cst_83 = arith.constant 3.200000e+01 : f32
      %189 = vector.broadcast %cst_83 : f32 to vector<16x1xf32>
      %190 = arith.divf %188, %189 : vector<16x1xf32>
      %191 = vector.broadcast %190 : vector<16x1xf32> to vector<16x32xf32>
      %192 = arith.subf %184, %191 : vector<16x32xf32>
      %193 = arith.mulf %192, %192 : vector<16x32xf32>
      %cst_84 = arith.constant dense<0.000000e+00> : vector<16xf32>
      %194 = vector.multi_reduction <add>, %193, %cst_84 [1] : vector<16x32xf32> to vector<16xf32>
      %195 = vector.shape_cast %194 : vector<16xf32> to vector<16x1xf32>
      %cst_85 = arith.constant 3.200000e+01 : f32
      %196 = vector.broadcast %cst_85 : f32 to vector<16x1xf32>
      %197 = arith.divf %195, %196 : vector<16x1xf32>
      %198 = vector.broadcast %190 : vector<16x1xf32> to vector<16x32xf32>
      %199 = arith.subf %184, %198 : vector<16x32xf32>
      %cst_86 = arith.constant 9.99999996E-13 : f32
      %200 = vector.broadcast %cst_86 : f32 to vector<16x1xf32>
      %201 = arith.addf %197, %200 : vector<16x1xf32>
      %202 = math.rsqrt %201 : vector<16x1xf32>
      %203 = vector.broadcast %202 : vector<16x1xf32> to vector<16x32xf32>
      %204 = arith.mulf %199, %203 : vector<16x32xf32>
      %205 = vector.broadcast %185 : vector<1x32xf32> to vector<16x32xf32>
      %206 = arith.mulf %204, %205 : vector<16x32xf32>
      %207 = vector.broadcast %186 : vector<1x32xf32> to vector<16x32xf32>
      %208 = arith.addf %206, %207 : vector<16x32xf32>
      %c0_87 = arith.constant 0 : index
      %c0_88 = arith.constant 0 : index
      %209 = vector.load %arg22[%c0_87, %c0_88] : memref<16x32xf32, #tpu.memory_space<vmem>>, vector<16x32xf32>
      tpu.vector_store %arg22[%c0_87, %c0_88], %208 {strides = array<i32>} : memref<16x32xf32, #tpu.memory_space<vmem>>, vector<16x32xf32>,
    } else {
    }
    %c0 = arith.constant 0 : index
    %c0_1 = arith.constant 0 : index
    %3 = vector.load %arg22[%c0, %c0_1] : memref<16x32xf32, #tpu.memory_space<vmem>>, vector<16x32xf32>
    %c0_2 = arith.constant 0 : index
    %c0_3 = arith.constant 0 : index
    %4 = vector.load %arg2[%c0_2, %c0_3] : memref<2x8xf32, #tpu.memory_space<vmem>>, vector<2x8xf32>
    %5 = arith.truncf %3 : vector<16x32xf32> to vector<16x32xbf16>
    %c0_4 = arith.constant 0 : index
    %c0_5 = arith.constant 0 : index
    %c0_6 = arith.constant 0 : index
    %6 = vector.load %arg5[%c0_4, %c0_5, %c0_6] : memref<1x32x96xbf16, #tpu.memory_space<vmem>>, vector<1x32x96xbf16>
    %7 = vector.shape_cast %6 : vector<1x32x96xbf16> to vector<32x96xbf16>
    %cst = arith.constant dense<0.000000e+00> : vector<16x96xf32>
    %8 = tpu.matmul %5, %7, %cst {dimension_numbers = #tpu.dot_dimension_numbers<[1], [0], [0], [1], [0, 0, 1, 1], [], []>} : vector<16x32xbf16>, vector<32x96xbf16>, vector<16x96xf32> -> vector<16x96xf32>
    %c0_7 = arith.constant 0 : index
    %c0_8 = arith.constant 0 : index
    %c0_9 = arith.constant 0 : index
    %9 = vector.load %arg6[%c0_7, %c0_8, %c0_9] : memref<1x1x96xf32, #tpu.memory_space<vmem>>, vector<1x1x96xf32>
    %10 = vector.shape_cast %9 : vector<1x1x96xf32> to vector<1x96xf32>
    %11 = vector.broadcast %10 : vector<1x96xf32> to vector<16x96xf32>
    %12 = arith.addf %8, %11 : vector<16x96xf32>
    %13 = vector.extract_strided_slice %12 {offsets = [0, 0], sizes = [16, 32], strides = [1, 1]} : vector<16x96xf32> to vector<16x32xf32>
    %14 = vector.extract_strided_slice %12 {offsets = [0, 32], sizes = [16, 32], strides = [1, 1]} : vector<16x96xf32> to vector<16x32xf32>
    %15 = vector.extract_strided_slice %12 {offsets = [0, 64], sizes = [16, 32], strides = [1, 1]} : vector<16x96xf32> to vector<16x32xf32>
    %16 = vector.extract_strided_slice %4 {offsets = [0, 0], sizes = [1, 8], strides = [1, 1]} : vector<2x8xf32> to vector<1x8xf32>
    %17 = vector.extract_strided_slice %13 {offsets = [0, 0], sizes = [8, 16], strides = [1, 1]} : vector<16x32xf32> to vector<8x16xf32>
    %18 = vector.extract_strided_slice %14 {offsets = [0, 0], sizes = [8, 16], strides = [1, 1]} : vector<16x32xf32> to vector<8x16xf32>
    %19 = vector.extract_strided_slice %15 {offsets = [0, 0], sizes = [8, 16], strides = [1, 1]} : vector<16x32xf32> to vector<8x16xf32>
    %cst_10 = arith.constant dense<0.000000e+00> : vector<8x8xf32>
    %20 = tpu.matmul %17, %18, %cst_10 {dimension_numbers = #tpu.dot_dimension_numbers<[1], [1], [0], [0], [0, 0, 1, 0], [], []>} : vector<8x16xf32>, vector<8x16xf32>, vector<8x8xf32> -> vector<8x8xf32>
    %21 = vector.broadcast %16 : vector<1x8xf32> to vector<8x8xf32>
    %22 = arith.addf %20, %21 : vector<8x8xf32>
    %cst_11 = arith.constant dense<0xFF800000> : vector<8xf32>
    %23 = vector.multi_reduction <maximumf>, %22, %cst_11 [1] : vector<8x8xf32> to vector<8xf32>
    %24 = vector.shape_cast %23 : vector<8xf32> to vector<8x1xf32>
    %25 = vector.broadcast %24 : vector<8x1xf32> to vector<8x8xf32>
    %26 = arith.subf %22, %25 : vector<8x8xf32>
    %27 = math.exp %26 : vector<8x8xf32>
    %cst_12 = arith.constant dense<0.000000e+00> : vector<8xf32>
    %28 = vector.multi_reduction <add>, %27, %cst_12 [1] : vector<8x8xf32> to vector<8xf32>
    %29 = vector.shape_cast %28 : vector<8xf32> to vector<8x1xf32>
    %30 = tpu.reciprocal %29 {approx = true} : vector<8x1xf32> -> vector<8x1xf32>
    %31 = vector.broadcast %30 : vector<8x1xf32> to vector<8x8xf32>
    %32 = arith.mulf %27, %31 : vector<8x8xf32>
    %cst_13 = arith.constant dense<0.000000e+00> : vector<8x16xf32>
    %33 = tpu.matmul %32, %19, %cst_13 {dimension_numbers = #tpu.dot_dimension_numbers<[1], [0], [0], [1], [0, 0, 1, 1], [], []>} : vector<8x8xf32>, vector<8x16xf32>, vector<8x16xf32> -> vector<8x16xf32>
    %34 = vector.extract_strided_slice %13 {offsets = [0, 16], sizes = [8, 16], strides = [1, 1]} : vector<16x32xf32> to vector<8x16xf32>
    %35 = vector.extract_strided_slice %14 {offsets = [0, 16], sizes = [8, 16], strides = [1, 1]} : vector<16x32xf32> to vector<8x16xf32>
    %36 = vector.extract_strided_slice %15 {offsets = [0, 16], sizes = [8, 16], strides = [1, 1]} : vector<16x32xf32> to vector<8x16xf32>
    %cst_14 = arith.constant dense<0.000000e+00> : vector<8x8xf32>
    %37 = tpu.matmul %34, %35, %cst_14 {dimension_numbers = #tpu.dot_dimension_numbers<[1], [1], [0], [0], [0, 0, 1, 0], [], []>} : vector<8x16xf32>, vector<8x16xf32>, vector<8x8xf32> -> vector<8x8xf32>
    %38 = vector.broadcast %16 : vector<1x8xf32> to vector<8x8xf32>
    %39 = arith.addf %37, %38 : vector<8x8xf32>
    %cst_15 = arith.constant dense<0xFF800000> : vector<8xf32>
    %40 = vector.multi_reduction <maximumf>, %39, %cst_15 [1] : vector<8x8xf32> to vector<8xf32>
    %41 = vector.shape_cast %40 : vector<8xf32> to vector<8x1xf32>
    %42 = vector.broadcast %41 : vector<8x1xf32> to vector<8x8xf32>
    %43 = arith.subf %39, %42 : vector<8x8xf32>
    %44 = math.exp %43 : vector<8x8xf32>
    %cst_16 = arith.constant dense<0.000000e+00> : vector<8xf32>
    %45 = vector.multi_reduction <add>, %44, %cst_16 [1] : vector<8x8xf32> to vector<8xf32>
    %46 = vector.shape_cast %45 : vector<8xf32> to vector<8x1xf32>
    %47 = tpu.reciprocal %46 {approx = true} : vector<8x1xf32> -> vector<8x1xf32>
    %48 = vector.broadcast %47 : vector<8x1xf32> to vector<8x8xf32>
    %49 = arith.mulf %44, %48 : vector<8x8xf32>
    %cst_17 = arith.constant dense<0.000000e+00> : vector<8x16xf32>
    %50 = tpu.matmul %49, %36, %cst_17 {dimension_numbers = #tpu.dot_dimension_numbers<[1], [0], [0], [1], [0, 0, 1, 1], [], []>} : vector<8x8xf32>, vector<8x16xf32>, vector<8x16xf32> -> vector<8x16xf32>
    %51 = tpu.concatenate %33, %50 in 1 : vector<8x16xf32>, vector<8x16xf32> -> vector<8x32xf32>
    %52 = vector.extract_strided_slice %4 {offsets = [1, 0], sizes = [1, 8], strides = [1, 1]} : vector<2x8xf32> to vector<1x8xf32>
    %53 = vector.extract_strided_slice %13 {offsets = [8, 0], sizes = [8, 16], strides = [1, 1]} : vector<16x32xf32> to vector<8x16xf32>
    %54 = vector.extract_strided_slice %14 {offsets = [8, 0], sizes = [8, 16], strides = [1, 1]} : vector<16x32xf32> to vector<8x16xf32>
    %55 = vector.extract_strided_slice %15 {offsets = [8, 0], sizes = [8, 16], strides = [1, 1]} : vector<16x32xf32> to vector<8x16xf32>
    %cst_18 = arith.constant dense<0.000000e+00> : vector<8x8xf32>
    %56 = tpu.matmul %53, %54, %cst_18 {dimension_numbers = #tpu.dot_dimension_numbers<[1], [1], [0], [0], [0, 0, 1, 0], [], []>} : vector<8x16xf32>, vector<8x16xf32>, vector<8x8xf32> -> vector<8x8xf32>
    %57 = vector.broadcast %52 : vector<1x8xf32> to vector<8x8xf32>
    %58 = arith.addf %56, %57 : vector<8x8xf32>
    %cst_19 = arith.constant dense<0xFF800000> : vector<8xf32>
    %59 = vector.multi_reduction <maximumf>, %58, %cst_19 [1] : vector<8x8xf32> to vector<8xf32>
    %60 = vector.shape_cast %59 : vector<8xf32> to vector<8x1xf32>
    %61 = vector.broadcast %60 : vector<8x1xf32> to vector<8x8xf32>
    %62 = arith.subf %58, %61 : vector<8x8xf32>
    %63 = math.exp %62 : vector<8x8xf32>
    %cst_20 = arith.constant dense<0.000000e+00> : vector<8xf32>
    %64 = vector.multi_reduction <add>, %63, %cst_20 [1] : vector<8x8xf32> to vector<8xf32>
    %65 = vector.shape_cast %64 : vector<8xf32> to vector<8x1xf32>
    %66 = tpu.reciprocal %65 {approx = true} : vector<8x1xf32> -> vector<8x1xf32>
    %67 = vector.broadcast %66 : vector<8x1xf32> to vector<8x8xf32>
    %68 = arith.mulf %63, %67 : vector<8x8xf32>
    %cst_21 = arith.constant dense<0.000000e+00> : vector<8x16xf32>
    %69 = tpu.matmul %68, %55, %cst_21 {dimension_numbers = #tpu.dot_dimension_numbers<[1], [0], [0], [1], [0, 0, 1, 1], [], []>} : vector<8x8xf32>, vector<8x16xf32>, vector<8x16xf32> -> vector<8x16xf32>
    %70 = vector.extract_strided_slice %13 {offsets = [8, 16], sizes = [8, 16], strides = [1, 1]} : vector<16x32xf32> to vector<8x16xf32>
    %71 = vector.extract_strided_slice %14 {offsets = [8, 16], sizes = [8, 16], strides = [1, 1]} : vector<16x32xf32> to vector<8x16xf32>
    %72 = vector.extract_strided_slice %15 {offsets = [8, 16], sizes = [8, 16], strides = [1, 1]} : vector<16x32xf32> to vector<8x16xf32>
    %cst_22 = arith.constant dense<0.000000e+00> : vector<8x8xf32>
    %73 = tpu.matmul %70, %71, %cst_22 {dimension_numbers = #tpu.dot_dimension_numbers<[1], [1], [0], [0], [0, 0, 1, 0], [], []>} : vector<8x16xf32>, vector<8x16xf32>, vector<8x8xf32> -> vector<8x8xf32>
    %74 = vector.broadcast %52 : vector<1x8xf32> to vector<8x8xf32>
    %75 = arith.addf %73, %74 : vector<8x8xf32>
    %cst_23 = arith.constant dense<0xFF800000> : vector<8xf32>
    %76 = vector.multi_reduction <maximumf>, %75, %cst_23 [1] : vector<8x8xf32> to vector<8xf32>
    %77 = vector.shape_cast %76 : vector<8xf32> to vector<8x1xf32>
    %78 = vector.broadcast %77 : vector<8x1xf32> to vector<8x8xf32>
    %79 = arith.subf %75, %78 : vector<8x8xf32>
    %80 = math.exp %79 : vector<8x8xf32>
    %cst_24 = arith.constant dense<0.000000e+00> : vector<8xf32>
    %81 = vector.multi_reduction <add>, %80, %cst_24 [1] : vector<8x8xf32> to vector<8xf32>
    %82 = vector.shape_cast %81 : vector<8xf32> to vector<8x1xf32>
    %83 = tpu.reciprocal %82 {approx = true} : vector<8x1xf32> -> vector<8x1xf32>
    %84 = vector.broadcast %83 : vector<8x1xf32> to vector<8x8xf32>
    %85 = arith.mulf %80, %84 : vector<8x8xf32>
    %cst_25 = arith.constant dense<0.000000e+00> : vector<8x16xf32>
    %86 = tpu.matmul %85, %72, %cst_25 {dimension_numbers = #tpu.dot_dimension_numbers<[1], [0], [0], [1], [0, 0, 1, 1], [], []>} : vector<8x8xf32>, vector<8x16xf32>, vector<8x16xf32> -> vector<8x16xf32>
    %87 = tpu.concatenate %69, %86 in 1 : vector<8x16xf32>, vector<8x16xf32> -> vector<8x32xf32>
    %88 = tpu.concatenate %51, %87 in 0 : vector<8x32xf32>, vector<8x32xf32> -> vector<16x32xf32>
    %89 = arith.truncf %88 : vector<16x32xf32> to vector<16x32xbf16>
    %c0_26 = arith.constant 0 : index
    %c0_27 = arith.constant 0 : index
    %c0_28 = arith.constant 0 : index
    %90 = vector.load %arg7[%c0_26, %c0_27, %c0_28] : memref<1x32x32xbf16, #tpu.memory_space<vmem>>, vector<1x32x32xbf16>
    %91 = vector.shape_cast %90 : vector<1x32x32xbf16> to vector<32x32xbf16>
    %cst_29 = arith.constant dense<0.000000e+00> : vector<16x32xf32>
    %92 = tpu.matmul %89, %91, %cst_29 {dimension_numbers = #tpu.dot_dimension_numbers<[1], [0], [0], [1], [0, 0, 1, 1], [], []>} : vector<16x32xbf16>, vector<32x32xbf16>, vector<16x32xf32> -> vector<16x32xf32>
    %c0_30 = arith.constant 0 : index
    %c0_31 = arith.constant 0 : index
    %c0_32 = arith.constant 0 : index
    %93 = vector.load %arg8[%c0_30, %c0_31, %c0_32] : memref<1x1x32xf32, #tpu.memory_space<vmem>>, vector<1x1x32xf32>
    %94 = vector.shape_cast %93 : vector<1x1x32xf32> to vector<1x32xf32>
    %95 = vector.broadcast %94 : vector<1x32xf32> to vector<16x32xf32>
    %96 = arith.addf %92, %95 : vector<16x32xf32>
    %97 = arith.addf %96, %3 : vector<16x32xf32>
    %c0_33 = arith.constant 0 : index
    %c0_34 = arith.constant 0 : index
    %c0_35 = arith.constant 0 : index
    %98 = vector.load %arg9[%c0_33, %c0_34, %c0_35] : memref<1x1x32xf32, #tpu.memory_space<vmem>>, vector<1x1x32xf32>
    %99 = vector.shape_cast %98 : vector<1x1x32xf32> to vector<1x32xf32>
    %c0_36 = arith.constant 0 : index
    %c0_37 = arith.constant 0 : index
    %c0_38 = arith.constant 0 : index
    %100 = vector.load %arg10[%c0_36, %c0_37, %c0_38] : memref<1x1x32xf32, #tpu.memory_space<vmem>>, vector<1x1x32xf32>
    %101 = vector.shape_cast %100 : vector<1x1x32xf32> to vector<1x32xf32>
    %cst_39 = arith.constant dense<0.000000e+00> : vector<16xf32>
    %102 = vector.multi_reduction <add>, %97, %cst_39 [1] : vector<16x32xf32> to vector<16xf32>
    %103 = vector.shape_cast %102 : vector<16xf32> to vector<16x1xf32>
    %cst_40 = arith.constant 3.200000e+01 : f32
    %104 = vector.broadcast %cst_40 : f32 to vector<16x1xf32>
    %105 = arith.divf %103, %104 : vector<16x1xf32>
    %106 = vector.broadcast %105 : vector<16x1xf32> to vector<16x32xf32>
    %107 = arith.subf %97, %106 : vector<16x32xf32>
    %108 = arith.mulf %107, %107 : vector<16x32xf32>
    %cst_41 = arith.constant dense<0.000000e+00> : vector<16xf32>
    %109 = vector.multi_reduction <add>, %108, %cst_41 [1] : vector<16x32xf32> to vector<16xf32>
    %110 = vector.shape_cast %109 : vector<16xf32> to vector<16x1xf32>
    %cst_42 = arith.constant 3.200000e+01 : f32
    %111 = vector.broadcast %cst_42 : f32 to vector<16x1xf32>
    %112 = arith.divf %110, %111 : vector<16x1xf32>
    %113 = vector.broadcast %105 : vector<16x1xf32> to vector<16x32xf32>
    %114 = arith.subf %97, %113 : vector<16x32xf32>
    %cst_43 = arith.constant 9.99999996E-13 : f32
    %115 = vector.broadcast %cst_43 : f32 to vector<16x1xf32>
    %116 = arith.addf %112, %115 : vector<16x1xf32>
    %117 = math.rsqrt %116 : vector<16x1xf32>
    %118 = vector.broadcast %117 : vector<16x1xf32> to vector<16x32xf32>
    %119 = arith.mulf %114, %118 : vector<16x32xf32>
    %120 = vector.broadcast %99 : vector<1x32xf32> to vector<16x32xf32>
    %121 = arith.mulf %119, %120 : vector<16x32xf32>
    %122 = vector.broadcast %101 : vector<1x32xf32> to vector<16x32xf32>
    %123 = arith.addf %121, %122 : vector<16x32xf32>
    %124 = arith.truncf %123 : vector<16x32xf32> to vector<16x32xbf16>
    %c0_44 = arith.constant 0 : index
    %c0_45 = arith.constant 0 : index
    %c0_46 = arith.constant 0 : index
    %125 = vector.load %arg11[%c0_44, %c0_45, %c0_46] : memref<1x32x64xbf16, #tpu.memory_space<vmem>>, vector<1x32x64xbf16>
    %126 = vector.shape_cast %125 : vector<1x32x64xbf16> to vector<32x64xbf16>
    %cst_47 = arith.constant dense<0.000000e+00> : vector<16x64xf32>
    %127 = tpu.matmul %124, %126, %cst_47 {dimension_numbers = #tpu.dot_dimension_numbers<[1], [0], [0], [1], [0, 0, 1, 1], [], []>} : vector<16x32xbf16>, vector<32x64xbf16>, vector<16x64xf32> -> vector<16x64xf32>
    %c0_48 = arith.constant 0 : index
    %c0_49 = arith.constant 0 : index
    %c0_50 = arith.constant 0 : index
    %128 = vector.load %arg12[%c0_48, %c0_49, %c0_50] : memref<1x1x64xf32, #tpu.memory_space<vmem>>, vector<1x1x64xf32>
    %129 = vector.shape_cast %128 : vector<1x1x64xf32> to vector<1x64xf32>
    %130 = vector.broadcast %129 : vector<1x64xf32> to vector<16x64xf32>
    %131 = arith.addf %127, %130 : vector<16x64xf32>
    %132 = arith.mulf %131, %131 : vector<16x64xf32>
    %133 = arith.mulf %131, %132 : vector<16x64xf32>
    %cst_51 = arith.constant 4.471500e-02 : f32
    %134 = vector.broadcast %cst_51 : f32 to vector<16x64xf32>
    %135 = arith.mulf %134, %133 : vector<16x64xf32>
    %136 = arith.addf %131, %135 : vector<16x64xf32>
    %cst_52 = arith.constant 0.797884583 : f32
    %137 = vector.broadcast %cst_52 : f32 to vector<16x64xf32>
    %138 = arith.mulf %137, %136 : vector<16x64xf32>
    %139 = math.tanh %138 : vector<16x64xf32>
    %cst_53 = arith.constant 1.000000e+00 : f32
    %140 = vector.broadcast %cst_53 : f32 to vector<16x64xf32>
    %141 = arith.addf %140, %139 : vector<16x64xf32>
    %cst_54 = arith.constant 5.000000e-01 : f32
    %142 = vector.broadcast %cst_54 : f32 to vector<16x64xf32>
    %143 = arith.mulf %142, %141 : vector<16x64xf32>
    %144 = arith.mulf %131, %143 : vector<16x64xf32>
    %145 = arith.truncf %144 : vector<16x64xf32> to vector<16x64xbf16>
    %c0_55 = arith.constant 0 : index
    %c0_56 = arith.constant 0 : index
    %c0_57 = arith.constant 0 : index
    %146 = vector.load %arg13[%c0_55, %c0_56, %c0_57] : memref<1x64x32xbf16, #tpu.memory_space<vmem>>, vector<1x64x32xbf16>
    %147 = vector.shape_cast %146 : vector<1x64x32xbf16> to vector<64x32xbf16>
    %cst_58 = arith.constant dense<0.000000e+00> : vector<16x32xf32>
    %148 = tpu.matmul %145, %147, %cst_58 {dimension_numbers = #tpu.dot_dimension_numbers<[1], [0], [0], [1], [0, 0, 1, 1], [], []>} : vector<16x64xbf16>, vector<64x32xbf16>, vector<16x32xf32> -> vector<16x32xf32>
    %c0_59 = arith.constant 0 : index
    %c0_60 = arith.constant 0 : index
    %c0_61 = arith.constant 0 : index
    %149 = vector.load %arg14[%c0_59, %c0_60, %c0_61] : memref<1x1x32xf32, #tpu.memory_space<vmem>>, vector<1x1x32xf32>
    %150 = vector.shape_cast %149 : vector<1x1x32xf32> to vector<1x32xf32>
    %151 = vector.broadcast %150 : vector<1x32xf32> to vector<16x32xf32>
    %152 = arith.addf %148, %151 : vector<16x32xf32>
    %153 = arith.addf %152, %123 : vector<16x32xf32>
    %c0_62 = arith.constant 0 : index
    %c0_63 = arith.constant 0 : index
    %c0_64 = arith.constant 0 : index
    %154 = vector.load %arg15[%c0_62, %c0_63, %c0_64] : memref<1x1x32xf32, #tpu.memory_space<vmem>>, vector<1x1x32xf32>
    %155 = vector.shape_cast %154 : vector<1x1x32xf32> to vector<1x32xf32>
    %c0_65 = arith.constant 0 : index
    %c0_66 = arith.constant 0 : index
    %c0_67 = arith.constant 0 : index
    %156 = vector.load %arg16[%c0_65, %c0_66, %c0_67] : memref<1x1x32xf32, #tpu.memory_space<vmem>>, vector<1x1x32xf32>
    %157 = vector.shape_cast %156 : vector<1x1x32xf32> to vector<1x32xf32>
    %cst_68 = arith.constant dense<0.000000e+00> : vector<16xf32>
    %158 = vector.multi_reduction <add>, %153, %cst_68 [1] : vector<16x32xf32> to vector<16xf32>
    %159 = vector.shape_cast %158 : vector<16xf32> to vector<16x1xf32>
    %cst_69 = arith.constant 3.200000e+01 : f32
    %160 = vector.broadcast %cst_69 : f32 to vector<16x1xf32>
    %161 = arith.divf %159, %160 : vector<16x1xf32>
    %162 = vector.broadcast %161 : vector<16x1xf32> to vector<16x32xf32>
    %163 = arith.subf %153, %162 : vector<16x32xf32>
    %164 = arith.mulf %163, %163 : vector<16x32xf32>
    %cst_70 = arith.constant dense<0.000000e+00> : vector<16xf32>
    %165 = vector.multi_reduction <add>, %164, %cst_70 [1] : vector<16x32xf32> to vector<16xf32>
    %166 = vector.shape_cast %165 : vector<16xf32> to vector<16x1xf32>
    %cst_71 = arith.constant 3.200000e+01 : f32
    %167 = vector.broadcast %cst_71 : f32 to vector<16x1xf32>
    %168 = arith.divf %166, %167 : vector<16x1xf32>
    %169 = vector.broadcast %161 : vector<16x1xf32> to vector<16x32xf32>
    %170 = arith.subf %153, %169 : vector<16x32xf32>
    %cst_72 = arith.constant 9.99999996E-13 : f32
    %171 = vector.broadcast %cst_72 : f32 to vector<16x1xf32>
    %172 = arith.addf %168, %171 : vector<16x1xf32>
    %173 = math.rsqrt %172 : vector<16x1xf32>
    %174 = vector.broadcast %173 : vector<16x1xf32> to vector<16x32xf32>
    %175 = arith.mulf %170, %174 : vector<16x32xf32>
    %176 = vector.broadcast %155 : vector<1x32xf32> to vector<16x32xf32>
    %177 = arith.mulf %175, %176 : vector<16x32xf32>
    %178 = vector.broadcast %157 : vector<1x32xf32> to vector<16x32xf32>
    %179 = arith.addf %177, %178 : vector<16x32xf32>
    %c0_73 = arith.constant 0 : index
    %c0_74 = arith.constant 0 : index
    %180 = vector.load %arg22[%c0_73, %c0_74] : memref<16x32xf32, #tpu.memory_space<vmem>>, vector<16x32xf32>
    tpu.vector_store %arg22[%c0_73, %c0_74], %179 {strides = array<i32>} : memref<16x32xf32, #tpu.memory_space<vmem>>, vector<16x32xf32>,
    %c1_i32 = arith.constant 1 : i32
    %181 = arith.cmpi eq, %arg0, %c1_i32 : i32
    %182 = arith.extui %181 : i1 to i32
    %c0_i32_75 = arith.constant 0 : i32
    %183 = arith.cmpi ne, %182, %c0_i32_75 : i32
    scf.if %183 {
      %184 = vector.extract_strided_slice %179 {offsets = [0, 0], sizes = [1, 32], strides = [1, 1]} : vector<16x32xf32> to vector<1x32xf32>
      %185 = vector.extract_strided_slice %179 {offsets = [8, 0], sizes = [1, 32], strides = [1, 1]} : vector<16x32xf32> to vector<1x32xf32>
      %186 = tpu.concatenate %184, %185 in 0 : vector<1x32xf32>, vector<1x32xf32> -> vector<2x32xf32>
      %c0_76 = arith.constant 0 : index
      %c0_77 = arith.constant 0 : index
      %187 = vector.load %arg17[%c0_76, %c0_77] : memref<32x32xf32, #tpu.memory_space<vmem>>, vector<32x32xf32>
      %cst_78 = arith.constant dense<0.000000e+00> : vector<2x32xf32>
      %188 = tpu.matmul %186, %187, %cst_78 {dimension_numbers = #tpu.dot_dimension_numbers<[1], [0], [0], [1], [0, 0, 1, 1], [], []>} : vector<2x32xf32>, vector<32x32xf32>, vector<2x32xf32> -> vector<2x32xf32>
      %c0_79 = arith.constant 0 : index
      %c0_80 = arith.constant 0 : index
      %189 = vector.load %arg18[%c0_79, %c0_80] : memref<1x32xf32, #tpu.memory_space<vmem>>, vector<1x32xf32>
      %190 = vector.broadcast %189 : vector<1x32xf32> to vector<2x32xf32>
      %191 = arith.addf %188, %190 : vector<2x32xf32>
      %192 = math.tanh %191 : vector<2x32xf32>
      %c0_81 = arith.constant 0 : index
      %c0_82 = arith.constant 0 : index
      %193 = vector.load %arg19[%c0_81, %c0_82] : memref<32x2xf32, #tpu.memory_space<vmem>>, vector<32x2xf32>
      %cst_83 = arith.constant dense<0.000000e+00> : vector<2x2xf32>
      %194 = tpu.matmul %192, %193, %cst_83 {dimension_numbers = #tpu.dot_dimension_numbers<[1], [0], [0], [1], [0, 0, 1, 1], [], []>} : vector<2x32xf32>, vector<32x2xf32>, vector<2x2xf32> -> vector<2x2xf32>
      %c0_84 = arith.constant 0 : index
      %c0_85 = arith.constant 0 : index
      %195 = vector.load %arg20[%c0_84, %c0_85] : memref<1x2xf32, #tpu.memory_space<vmem>>, vector<1x2xf32>
      %196 = vector.broadcast %195 : vector<1x2xf32> to vector<2x2xf32>
      %197 = arith.addf %194, %196 : vector<2x2xf32>
      %cst_86 = arith.constant dense<0xFF800000> : vector<2xf32>
      %198 = vector.multi_reduction <maximumf>, %197, %cst_86 [1] : vector<2x2xf32> to vector<2xf32>
      %199 = vector.shape_cast %198 : vector<2xf32> to vector<2x1xf32>
      %200 = vector.broadcast %199 : vector<2x1xf32> to vector<2x2xf32>
      %201 = arith.subf %197, %200 : vector<2x2xf32>
      %202 = math.exp %201 : vector<2x2xf32>
      %cst_87 = arith.constant dense<0.000000e+00> : vector<2xf32>
      %203 = vector.multi_reduction <add>, %202, %cst_87 [1] : vector<2x2xf32> to vector<2xf32>
      %204 = vector.shape_cast %203 : vector<2xf32> to vector<2x1xf32>
      %205 = vector.broadcast %204 : vector<2x1xf32> to vector<2x2xf32>
      %206 = arith.divf %202, %205 : vector<2x2xf32>
      %c0_88 = arith.constant 0 : index
      %c0_89 = arith.constant 0 : index
      %207 = vector.load %arg21[%c0_88, %c0_89] : memref<2x2xf32, #tpu.memory_space<vmem>>, vector<2x2xf32>
      tpu.vector_store %arg21[%c0_88, %c0_89], %206 {strides = array<i32>} : memref<2x2xf32, #tpu.memory_space<vmem>>, vector<2x2xf32>,
    } else {
    }
    return
  }
  func.func @transform_0(%arg0: i32) -> (i32, i32) {
    %c0_i32 = arith.constant 0 : i32
    %c0_i32_0 = arith.constant 0 : i32
    %c0_i32_1 = arith.constant 0 : i32
    return %c0_i32, %c0_i32_0 : i32, i32
  }
  func.func @transform_1(%arg0: i32) -> (i32, i32) {
    %c0_i32 = arith.constant 0 : i32
    %c0_i32_0 = arith.constant 0 : i32
    %c0_i32_1 = arith.constant 0 : i32
    return %c0_i32, %c0_i32_0 : i32, i32
  }
  func.func @transform_2(%arg0: i32) -> (i32, i32) {
    %c0_i32 = arith.constant 0 : i32
    %c0_i32_0 = arith.constant 0 : i32
    %c0_i32_1 = arith.constant 0 : i32
    return %c0_i32, %c0_i32_0 : i32, i32
  }
  func.func @transform_3(%arg0: i32) -> (i32, i32) {
    %c0_i32 = arith.constant 0 : i32
    %c0_i32_0 = arith.constant 0 : i32
    %c0_i32_1 = arith.constant 0 : i32
    return %c0_i32, %c0_i32_0 : i32, i32
  }
  func.func @transform_4(%arg0: i32) -> (i32, i32, i32) {
    %c0_i32 = arith.constant 0 : i32
    %c0_i32_0 = arith.constant 0 : i32
    %c0_i32_1 = arith.constant 0 : i32
    return %arg0, %c0_i32, %c0_i32_0 : i32, i32, i32
  }
  func.func @transform_5(%arg0: i32) -> (i32, i32, i32) {
    %c0_i32 = arith.constant 0 : i32
    %c0_i32_0 = arith.constant 0 : i32
    %c0_i32_1 = arith.constant 0 : i32
    return %arg0, %c0_i32, %c0_i32_0 : i32, i32, i32
  }
  func.func @transform_6(%arg0: i32) -> (i32, i32, i32) {
    %c0_i32 = arith.constant 0 : i32
    %c0_i32_0 = arith.constant 0 : i32
    %c0_i32_1 = arith.constant 0 : i32
    return %arg0, %c0_i32, %c0_i32_0 : i32, i32, i32
  }
  func.func @transform_7(%arg0: i32) -> (i32, i32, i32) {
    %c0_i32 = arith.constant 0 : i32
    %c0_i32_0 = arith.constant 0 : i32
    %c0_i32_1 = arith.constant 0 : i32
    return %arg0, %c0_i32, %c0_i32_0 : i32, i32, i32
  }
  func.func @transform_8(%arg0: i32) -> (i32, i32, i32) {
    %c0_i32 = arith.constant 0 : i32
    %c0_i32_0 = arith.constant 0 : i32
    %c0_i32_1 = arith.constant 0 : i32
    return %arg0, %c0_i32, %c0_i32_0 : i32, i32, i32
  }
  func.func @transform_9(%arg0: i32) -> (i32, i32, i32) {
    %c0_i32 = arith.constant 0 : i32
    %c0_i32_0 = arith.constant 0 : i32
    %c0_i32_1 = arith.constant 0 : i32
    return %arg0, %c0_i32, %c0_i32_0 : i32, i32, i32
  }
  func.func @transform_10(%arg0: i32) -> (i32, i32, i32) {
    %c0_i32 = arith.constant 0 : i32
    %c0_i32_0 = arith.constant 0 : i32
    %c0_i32_1 = arith.constant 0 : i32
    return %arg0, %c0_i32, %c0_i32_0 : i32, i32, i32
  }
  func.func @transform_11(%arg0: i32) -> (i32, i32, i32) {
    %c0_i32 = arith.constant 0 : i32
    %c0_i32_0 = arith.constant 0 : i32
    %c0_i32_1 = arith.constant 0 : i32
    return %arg0, %c0_i32, %c0_i32_0 : i32, i32, i32
  }
  func.func @transform_12(%arg0: i32) -> (i32, i32, i32) {
    %c0_i32 = arith.constant 0 : i32
    %c0_i32_0 = arith.constant 0 : i32
    %c0_i32_1 = arith.constant 0 : i32
    return %arg0, %c0_i32, %c0_i32_0 : i32, i32, i32
  }
  func.func @transform_13(%arg0: i32) -> (i32, i32, i32) {
    %c0_i32 = arith.constant 0 : i32
    %c0_i32_0 = arith.constant 0 : i32
    %c0_i32_1 = arith.constant 0 : i32
    return %arg0, %c0_i32, %c0_i32_0 : i32, i32, i32
  }
  func.func @transform_14(%arg0: i32) -> (i32, i32, i32) {
    %c0_i32 = arith.constant 0 : i32
    %c0_i32_0 = arith.constant 0 : i32
    %c0_i32_1 = arith.constant 0 : i32
    return %arg0, %c0_i32, %c0_i32_0 : i32, i32, i32
  }
  func.func @transform_15(%arg0: i32) -> (i32, i32, i32) {
    %c0_i32 = arith.constant 0 : i32
    %c0_i32_0 = arith.constant 0 : i32
    %c0_i32_1 = arith.constant 0 : i32
    return %arg0, %c0_i32, %c0_i32_0 : i32, i32, i32
  }
  func.func @transform_16(%arg0: i32) -> (i32, i32) {
    %c0_i32 = arith.constant 0 : i32
    %c0_i32_0 = arith.constant 0 : i32
    %c0_i32_1 = arith.constant 0 : i32
    return %c0_i32, %c0_i32_0 : i32, i32
  }
  func.func @transform_17(%arg0: i32) -> (i32, i32) {
    %c0_i32 = arith.constant 0 : i32
    %c0_i32_0 = arith.constant 0 : i32
    %c0_i32_1 = arith.constant 0 : i32
    return %c0_i32, %c0_i32_0 : i32, i32
  }
  func.func @transform_18(%arg0: i32) -> (i32, i32) {
    %c0_i32 = arith.constant 0 : i32
    %c0_i32_0 = arith.constant 0 : i32
    %c0_i32_1 = arith.constant 0 : i32
    return %c0_i32, %c0_i32_0 : i32, i32
  }
  func.func @transform_19(%arg0: i32) -> (i32, i32) {
    %c0_i32 = arith.constant 0 : i32
    %c0_i32_0 = arith.constant 0 : i32
    %c0_i32_1 = arith.constant 0 : i32
    return %c0_i32, %c0_i32_0 : i32, i32
  }
  func.func @transform_20(%arg0: i32) -> (i32, i32) {
    %c0_i32 = arith.constant 0 : i32
    %c0_i32_0 = arith.constant 0 : i32
    %c0_i32_1 = arith.constant 0 : i32
    return %c0_i32, %c0_i32_0 : i32, i32
  }
}

</mosaic_0001>

<llo_original>
// kernel: tpu_custom_call.1
$region0: #{tpu_custom_call.1}
  #allocation0 [shape = 'u32[]', space=smem, size = 0x4, offset = 0x4, fixed_abs, tag = 'smem constant byte address 0x4 - core index']
  #allocation1 [shape = 'u32[72,128]{1,0:T(1,128)}', space=vmem, size = 0x9000, scoped, tag = 'internal scratch']
  #allocation2 [shape = 'f32[16,32]{1,0:T(8,128)}', space=vmem, size = 0x2000, scoped, tag = 'scratch operand']
  %s0 = inlined_call_operand.hbm [shape: f32[16,32], index: 0, kind: input, shape index: {}]
  %s1 = inlined_call_operand.vmem [shape: f32[2,8], index: 1, kind: input, shape index: {}]
  %s2 = inlined_call_operand.hbm [shape: f32[1,32], index: 2, kind: input, shape index: {}]
  %s3 = inlined_call_operand.hbm [shape: f32[1,32], index: 3, kind: input, shape index: {}]
  %s4 = inlined_call_operand.vmem [shape: bf16[2,32,96], index: 4, kind: input, shape index: {}]
  %s5 = inlined_call_operand.vmem [shape: f32[2,1,96], index: 5, kind: input, shape index: {}]
  %s6 = inlined_call_operand.vmem [shape: bf16[2,32,32], index: 6, kind: input, shape index: {}]
  %s7 = inlined_call_operand.vmem [shape: f32[2,1,32], index: 7, kind: input, shape index: {}]
  %s8 = inlined_call_operand.vmem [shape: f32[2,1,32], index: 8, kind: input, shape index: {}]
  %s9 = inlined_call_operand.vmem [shape: f32[2,1,32], index: 9, kind: input, shape index: {}]
  %s10 = inlined_call_operand.vmem [shape: bf16[2,32,64], index: 10, kind: input, shape index: {}]
  %s11 = inlined_call_operand.vmem [shape: f32[2,1,64], index: 11, kind: input, shape index: {}]
  %s12 = inlined_call_operand.vmem [shape: bf16[2,64,32], index: 12, kind: input, shape index: {}]
  %s13 = inlined_call_operand.hbm [shape: f32[2,1,32], index: 13, kind: input, shape index: {}]
  %s14 = inlined_call_operand.hbm [shape: f32[2,1,32], index: 14, kind: input, shape index: {}]
  %s15 = inlined_call_operand.hbm [shape: f32[2,1,32], index: 15, kind: input, shape index: {}]
  %s16 = inlined_call_operand.hbm [shape: f32[32,32], index: 16, kind: input, shape index: {}]
  %s17 = inlined_call_operand.vmem [shape: f32[1,32], index: 17, kind: input, shape index: {}]
  %s18 = inlined_call_operand.vmem [shape: f32[32,2], index: 18, kind: input, shape index: {}]
  %s19 = inlined_call_operand.vmem [shape: f32[1,2], index: 19, kind: input, shape index: {}]
  %s20 = inlined_call_operand.hbm [shape: f32[2,2], index: 20, kind: output, shape index: {}]
  %s21 = sld [smem:[#allocation0]]
  $region149: #{tpu_custom_call.1} parent=0
    _
  %s23 = ssub.s32 1, %s21
  %s24 = scalar_select 0, %s23, %s21
  $region1: #{tpu_custom_call.1} parent=0
    #allocation3 [shape = 'u8[8192]{0}', space=vmem, size = 0x2000, scoped, tag = 'input window, operand 0, single buffered']
    #allocation4 [shape = 's32[2]{0}', space=sflag, size = 0x8, scoped, tag = 'scoped memory for tpu_custom_call.1']
    #allocation5 [shape = 's32[2]{0}', space=sflag, size = 0x8, scoped, tag = 'scoped memory for tpu_custom_call.1']
    #allocation6 [shape = 'u8[512]{0}', space=vmem, size = 0x400, scoped, tag = 'input window, operand 2, single buffered']
    #allocation7 [shape = 's32[1]{0}', space=sflag, size = 0x4, scoped, tag = 'scoped memory for tpu_custom_call.1']
    #allocation8 [shape = 'u8[512]{0}', space=vmem, size = 0x400, scoped, tag = 'input window, operand 3, single buffered']
    #allocation9 [shape = 'u8[1024]{0}', space=vmem, size = 0x400, scoped, tag = 'input window, operand 13']
    #allocation10 [shape = 's32[2]{0}', space=sflag, size = 0x8, scoped, tag = 'scoped memory for tpu_custom_call.1']
    #allocation11 [shape = 'u8[1024]{0}', space=vmem, size = 0x400, scoped, tag = 'input window, operand 14']
    #allocation12 [shape = 'u8[1024]{0}', space=vmem, size = 0x400, scoped, tag = 'input window, operand 15']
    #allocation13 [shape = 's32[2]{0}', space=sflag, size = 0x8, scoped, tag = 'scoped memory for tpu_custom_call.1']
    #allocation14 [shape = 'u8[16384]{0}', space=vmem, size = 0x4000, scoped, tag = 'input window, operand 16, single buffered']
    #allocation15 [shape = 'u8[1024]{0}', space=vmem, size = 0x400, scoped, tag = 'output window, operand 0, single buffered']
    %25 = vsyncpa [#allocation4], 0
    %26 = vsyncpa [#allocation7], 0
    %27 = vsyncpa [#allocation10], 0
    %s28 = scalar_lea.sflag [#allocation10], 1
    %29 = vsyncpa %s28, 0
    %30 = vsyncpa [#allocation13], 0
    %s31 = scalar_lea.sflag [#allocation13], 1
    %32 = vsyncpa %s31, 0
    %33 = vsyncpa [#allocation5], 0
    loop: start=0, step=1, limit=4
    $region2: #{tpu_custom_call.1} parent=1 // loop_pre_header
      _
    $region3: #{tpu_custom_call.1} parent=1 // loop_header
      %s35 = sphi 0, %s39
      %p36 = scmp.ge.s32.totalorder %s35, 4
      %s43 = sphi 0, %s43
      %s45 = sphi 0, %s43
      %s46 = sphi 0, %s45
      %s60 = sphi 0, %s46
      %s64 = sphi 0, %s64
      %s66 = sphi 0, %s64
      %s67 = sphi 0, %s66
      %s81 = sphi 0, %s67
      %s85 = sphi 0, %s85
      %s87 = sphi 0, %s85
      %s88 = sphi 0, %s87
      %s102 = sphi 0, %s88
      %s106 = sphi 0, %s106
      %s108 = sphi 0, %s106
      %s109 = sphi 0, %s108
      %s123 = sphi 0, %s109
      %s129 = sphi 0, %s131
      %s132 = sphi 0, %s129
      %s133 = sphi 0, %s132
      %s149 = sphi 0, %s133
      %s155 = sphi 0, %s157
      %s158 = sphi 0, %s155
      %s159 = sphi 0, %s158
      %s175 = sphi 0, %s159
      %s181 = sphi 0, %s183
      %s184 = sphi 0, %s181
      %s185 = sphi 0, %s184
      %s201 = sphi 0, %s185
      %s207 = sphi 0, %s209
      %s210 = sphi 0, %s207
      %s211 = sphi 0, %s210
      %s227 = sphi 0, %s211
      %s233 = sphi 0, %s235
      %s236 = sphi 0, %s233
      %s237 = sphi 0, %s236
      %s253 = sphi 0, %s237
      %s259 = sphi 0, %s261
      %s262 = sphi 0, %s259
      %s263 = sphi 0, %s262
      %s279 = sphi 0, %s263
      %s285 = sphi 0, %s287
      %s288 = sphi 0, %s285
      %s289 = sphi 0, %s288
      %s305 = sphi 0, %s289
      %s311 = sphi 0, %s313
      %s314 = sphi 0, %s311
      %s315 = sphi 0, %s314
      %s331 = sphi 0, %s315
      %s337 = sphi 0, %s339
      %s340 = sphi 0, %s337
      %s341 = sphi 0, %s340
      %s357 = sphi 0, %s341
      %s363 = sphi 0, %s365
      %s366 = sphi 0, %s363
      %s367 = sphi 0, %s366
      %s383 = sphi 0, %s367
      %s389 = sphi 0, %s391
      %s392 = sphi 0, %s389
      %s393 = sphi 0, %s392
      %s409 = sphi 0, %s393
      %s415 = sphi 0, %s417
      %s418 = sphi 0, %s415
      %s419 = sphi 0, %s418
      %s435 = sphi 0, %s419
      %s439 = sphi 0, %s439
      %s441 = sphi 0, %s439
      %s442 = sphi 0, %s441
      %s456 = sphi 0, %s442
      %s460 = sphi 0, %s460
      %s462 = sphi 0, %s460
      %s463 = sphi 0, %s462
      %s477 = sphi 0, %s463
      %s481 = sphi 0, %s481
      %s483 = sphi 0, %s481
      %s484 = sphi 0, %s483
      %s498 = sphi 0, %s484
      %s502 = sphi 0, %s502
      %s504 = sphi 0, %s502
      %s505 = sphi 0, %s504
      %s519 = sphi 0, %s505
      %s523 = sphi 0, %s523
      %s525 = sphi 0, %s523
      %s526 = sphi 0, %s525
      %s540 = sphi 0, %s526
    $region4: #{tpu_custom_call.1} parent=1 // loop_header_branch
      %38 = sbr.rel (%p36) target = $region8
    $region5: #{tpu_custom_call.1} parent=1 // loop_body
      %s40 = ssub.s32 %s35, 1
      %s41 = ssub.s32 %s35, 2
      %s42 = sadd.s32 %s35, 1
      %s44 = sadd.s32 %s43, 1
      %p47 = scmp.eq.s32.totalorder %s35, 1
      %p48 = scmp.ne.s32.totalorder %s43, %s45
      %p49 = scmp.eq.s32.totalorder %s35, 0
      %p50 = por %p48, %p49
      %p51 = scmp.ne.s32.totalorder %s43, %s45
      %p52 = scmp.eq.s32.totalorder %s40, 1
      %p53 = por %p51, %p52
      %p54 = scmp.ne.s32.totalorder %s45, %s46
      %p55 = scmp.eq.s32.totalorder %s40, 0
      %p56 = por %p54, %p55
      %p57 = scmp.ne.s32.totalorder %s45, %s46
      %p58 = scmp.eq.s32.totalorder %s41, 1
      %p59 = por %p57, %p58
      %p61 = scmp.ne.s32.totalorder %s46, %s60
      %p62 = scmp.eq.s32.totalorder %s41, 0
      %p63 = por %p61, %p62
      %s65 = sadd.s32 %s64, 1
      %p68 = scmp.eq.s32.totalorder %s35, 1
      %p69 = scmp.ne.s32.totalorder %s64, %s66
      %p70 = scmp.eq.s32.totalorder %s35, 0
      %p71 = por %p69, %p70
      %p72 = scmp.ne.s32.totalorder %s64, %s66
      %p73 = scmp.eq.s32.totalorder %s40, 1
      %p74 = por %p72, %p73
      %p75 = scmp.ne.s32.totalorder %s66, %s67
      %p76 = scmp.eq.s32.totalorder %s40, 0
      %p77 = por %p75, %p76
      %p78 = scmp.ne.s32.totalorder %s66, %s67
      %p79 = scmp.eq.s32.totalorder %s41, 1
      %p80 = por %p78, %p79
      %p82 = scmp.ne.s32.totalorder %s67, %s81
      %p83 = scmp.eq.s32.totalorder %s41, 0
      %p84 = por %p82, %p83
      %s86 = sadd.s32 %s85, 1
      %p89 = scmp.eq.s32.totalorder %s35, 1
      %p90 = scmp.ne.s32.totalorder %s85, %s87
      %p91 = scmp.eq.s32.totalorder %s35, 0
      %p92 = por %p90, %p91
      %p93 = scmp.ne.s32.totalorder %s85, %s87
      %p94 = scmp.eq.s32.totalorder %s40, 1
      %p95 = por %p93, %p94
      %p96 = scmp.ne.s32.totalorder %s87, %s88
      %p97 = scmp.eq.s32.totalorder %s40, 0
      %p98 = por %p96, %p97
      %p99 = scmp.ne.s32.totalorder %s87, %s88
      %p100 = scmp.eq.s32.totalorder %s41, 1
      %p101 = por %p99, %p100
      %p103 = scmp.ne.s32.totalorder %s88, %s102
      %p104 = scmp.eq.s32.totalorder %s41, 0
      %p105 = por %p103, %p104
      %s107 = sadd.s32 %s106, 1
      %p110 = scmp.eq.s32.totalorder %s35, 1
      %p111 = scmp.ne.s32.totalorder %s106, %s108
      %p112 = scmp.eq.s32.totalorder %s35, 0
      %p113 = por %p111, %p112
      %p114 = scmp.ne.s32.totalorder %s106, %s108
      %p115 = scmp.eq.s32.totalorder %s40, 1
      %p116 = por %p114, %p115
      %p117 = scmp.ne.s32.totalorder %s108, %s109
      %p118 = scmp.eq.s32.totalorder %s40, 0
      %p119 = por %p117, %p118
      %p120 = scmp.ne.s32.totalorder %s108, %s109
      %p121 = scmp.eq.s32.totalorder %s41, 1
      %p122 = por %p120, %p121
      %p124 = scmp.ne.s32.totalorder %s109, %s123
      %p125 = scmp.eq.s32.totalorder %s41, 0
      %p126 = por %p124, %p125
      %s127 = ssub.s32 %s35, %s42
      %p128 = scmp.eq.s32.totalorder %s127, 0
      %s130 = sadd.s32 %s129, 1
      %s131 = scalar_select %p128, %s129, %s130
      %p134 = pneg %p128
      %p135 = scmp.eq.s32.totalorder %s35, 1
      %p136 = por %p134, %p135
      %p137 = scmp.ne.s32.totalorder %s129, %s132
      %p138 = scmp.eq.s32.totalorder %s35, 0
      %p139 = por %p137, %p138
      %p140 = scmp.ne.s32.totalorder %s129, %s132
      %p141 = scmp.eq.s32.totalorder %s40, 1
      %p142 = por %p140, %p141
      %p143 = scmp.ne.s32.totalorder %s132, %s133
      %p144 = scmp.eq.s32.totalorder %s40, 0
      %p145 = por %p143, %p144
      %p146 = scmp.ne.s32.totalorder %s132, %s133
      %p147 = scmp.eq.s32.totalorder %s41, 1
      %p148 = por %p146, %p147
      %p150 = scmp.ne.s32.totalorder %s133, %s149
      %p151 = scmp.eq.s32.totalorder %s41, 0
      %p152 = por %p150, %p151
      %s153 = ssub.s32 %s35, %s42
      %p154 = scmp.eq.s32.totalorder %s153, 0
      %s156 = sadd.s32 %s155, 1
      %s157 = scalar_select %p154, %s155, %s156
      %p160 = pneg %p154
      %p161 = scmp.eq.s32.totalorder %s35, 1
      %p162 = por %p160, %p161
      %p163 = scmp.ne.s32.totalorder %s155, %s158
      %p164 = scmp.eq.s32.totalorder %s35, 0
      %p165 = por %p163, %p164
      %p166 = scmp.ne.s32.totalorder %s155, %s158
      %p167 = scmp.eq.s32.totalorder %s40, 1
      %p168 = por %p166, %p167
      %p169 = scmp.ne.s32.totalorder %s158, %s159
      %p170 = scmp.eq.s32.totalorder %s40, 0
      %p171 = por %p169, %p170
      %p172 = scmp.ne.s32.totalorder %s158, %s159
      %p173 = scmp.eq.s32.totalorder %s41, 1
      %p174 = por %p172, %p173
      %p176 = scmp.ne.s32.totalorder %s159, %s175
      %p177 = scmp.eq.s32.totalorder %s41, 0
      %p178 = por %p176, %p177
      %s179 = ssub.s32 %s35, %s42
      %p180 = scmp.eq.s32.totalorder %s179, 0
      %s182 = sadd.s32 %s181, 1
      %s183 = scalar_select %p180, %s181, %s182
      %p186 = pneg %p180
      %p187 = scmp.eq.s32.totalorder %s35, 1
      %p188 = por %p186, %p187
      %p189 = scmp.ne.s32.totalorder %s181, %s184
      %p190 = scmp.eq.s32.totalorder %s35, 0
      %p191 = por %p189, %p190
      %p192 = scmp.ne.s32.totalorder %s181, %s184
      %p193 = scmp.eq.s32.totalorder %s40, 1
      %p194 = por %p192, %p193
      %p195 = scmp.ne.s32.totalorder %s184, %s185
      %p196 = scmp.eq.s32.totalorder %s40, 0
      %p197 = por %p195, %p196
      %p198 = scmp.ne.s32.totalorder %s184, %s185
      %p199 = scmp.eq.s32.totalorder %s41, 1
      %p200 = por %p198, %p199
      %p202 = scmp.ne.s32.totalorder %s185, %s201
      %p203 = scmp.eq.s32.totalorder %s41, 0
      %p204 = por %p202, %p203
      %s205 = ssub.s32 %s35, %s42
      %p206 = scmp.eq.s32.totalorder %s205, 0
      %s208 = sadd.s32 %s207, 1
      %s209 = scalar_select %p206, %s207, %s208
      %p212 = pneg %p206
      %p213 = scmp.eq.s32.totalorder %s35, 1
      %p214 = por %p212, %p213
      %p215 = scmp.ne.s32.totalorder %s207, %s210
      %p216 = scmp.eq.s32.totalorder %s35, 0
      %p217 = por %p215, %p216
      %p218 = scmp.ne.s32.totalorder %s207, %s210
      %p219 = scmp.eq.s32.totalorder %s40, 1
      %p220 = por %p218, %p219
      %p221 = scmp.ne.s32.totalorder %s210, %s211
      %p222 = scmp.eq.s32.totalorder %s40, 0
      %p223 = por %p221, %p222
      %p224 = scmp.ne.s32.totalorder %s210, %s211
      %p225 = scmp.eq.s32.totalorder %s41, 1
      %p226 = por %p224, %p225
      %p228 = scmp.ne.s32.totalorder %s211, %s227
      %p229 = scmp.eq.s32.totalorder %s41, 0
      %p230 = por %p228, %p229
      %s231 = ssub.s32 %s35, %s42
      %p232 = scmp.eq.s32.totalorder %s231, 0
      %s234 = sadd.s32 %s233, 1
      %s235 = scalar_select %p232, %s233, %s234
      %p238 = pneg %p232
      %p239 = scmp.eq.s32.totalorder %s35, 1
      %p240 = por %p238, %p239
      %p241 = scmp.ne.s32.totalorder %s233, %s236
      %p242 = scmp.eq.s32.totalorder %s35, 0
      %p243 = por %p241, %p242
      %p244 = scmp.ne.s32.totalorder %s233, %s236
      %p245 = scmp.eq.s32.totalorder %s40, 1
      %p246 = por %p244, %p245
      %p247 = scmp.ne.s32.totalorder %s236, %s237
      %p248 = scmp.eq.s32.totalorder %s40, 0
      %p249 = por %p247, %p248
      %p250 = scmp.ne.s32.totalorder %s236, %s237
      %p251 = scmp.eq.s32.totalorder %s41, 1
      %p252 = por %p250, %p251
      %p254 = scmp.ne.s32.totalorder %s237, %s253
      %p255 = scmp.eq.s32.totalorder %s41, 0
      %p256 = por %p254, %p255
      %s257 = ssub.s32 %s35, %s42
      %p258 = scmp.eq.s32.totalorder %s257, 0
      %s260 = sadd.s32 %s259, 1
      %s261 = scalar_select %p258, %s259, %s260
      %p264 = pneg %p258
      %p265 = scmp.eq.s32.totalorder %s35, 1
      %p266 = por %p264, %p265
      %p267 = scmp.ne.s32.totalorder %s259, %s262
      %p268 = scmp.eq.s32.totalorder %s35, 0
      %p269 = por %p267, %p268
      %p270 = scmp.ne.s32.totalorder %s259, %s262
      %p271 = scmp.eq.s32.totalorder %s40, 1
      %p272 = por %p270, %p271
      %p273 = scmp.ne.s32.totalorder %s262, %s263
      %p274 = scmp.eq.s32.totalorder %s40, 0
      %p275 = por %p273, %p274
      %p276 = scmp.ne.s32.totalorder %s262, %s263
      %p277 = scmp.eq.s32.totalorder %s41, 1
      %p278 = por %p276, %p277
      %p280 = scmp.ne.s32.totalorder %s263, %s279
      %p281 = scmp.eq.s32.totalorder %s41, 0
      %p282 = por %p280, %p281
      %s283 = ssub.s32 %s35, %s42
      %p284 = scmp.eq.s32.totalorder %s283, 0
      %s286 = sadd.s32 %s285, 1
      %s287 = scalar_select %p284, %s285, %s286
      %p290 = pneg %p284
      %p291 = scmp.eq.s32.totalorder %s35, 1
      %p292 = por %p290, %p291
      %p293 = scmp.ne.s32.totalorder %s285, %s288
      %p294 = scmp.eq.s32.totalorder %s35, 0
      %p295 = por %p293, %p294
      %p296 = scmp.ne.s32.totalorder %s285, %s288
      %p297 = scmp.eq.s32.totalorder %s40, 1
      %p298 = por %p296, %p297
      %p299 = scmp.ne.s32.totalorder %s288, %s289
      %p300 = scmp.eq.s32.totalorder %s40, 0
      %p301 = por %p299, %p300
      %p302 = scmp.ne.s32.totalorder %s288, %s289
      %p303 = scmp.eq.s32.totalorder %s41, 1
      %p304 = por %p302, %p303
      %p306 = scmp.ne.s32.totalorder %s289, %s305
      %p307 = scmp.eq.s32.totalorder %s41, 0
      %p308 = por %p306, %p307
      %s309 = ssub.s32 %s35, %s42
      %p310 = scmp.eq.s32.totalorder %s309, 0
      %s312 = sadd.s32 %s311, 1
      %s313 = scalar_select %p310, %s311, %s312
      %p316 = pneg %p310
      %p317 = scmp.eq.s32.totalorder %s35, 1
      %p318 = por %p316, %p317
      %p319 = scmp.ne.s32.totalorder %s311, %s314
      %p320 = scmp.eq.s32.totalorder %s35, 0
      %p321 = por %p319, %p320
      %p322 = scmp.ne.s32.totalorder %s311, %s314
      %p323 = scmp.eq.s32.totalorder %s40, 1
      %p324 = por %p322, %p323
      %p325 = scmp.ne.s32.totalorder %s314, %s315
      %p326 = scmp.eq.s32.totalorder %s40, 0
      %p327 = por %p325, %p326
      %p328 = scmp.ne.s32.totalorder %s314, %s315
      %p329 = scmp.eq.s32.totalorder %s41, 1
      %p330 = por %p328, %p329
      %p332 = scmp.ne.s32.totalorder %s315, %s331
      %p333 = scmp.eq.s32.totalorder %s41, 0
      %p334 = por %p332, %p333
      %s335 = ssub.s32 %s35, %s42
      %p336 = scmp.eq.s32.totalorder %s335, 0
      %s338 = sadd.s32 %s337, 1
      %s339 = scalar_select %p336, %s337, %s338
      %p342 = pneg %p336
      %p343 = scmp.eq.s32.totalorder %s35, 1
      %p344 = por %p342, %p343
      %p345 = scmp.ne.s32.totalorder %s337, %s340
      %p346 = scmp.eq.s32.totalorder %s35, 0
      %p347 = por %p345, %p346
      %p348 = scmp.ne.s32.totalorder %s337, %s340
      %p349 = scmp.eq.s32.totalorder %s40, 1
      %p350 = por %p348, %p349
      %p351 = scmp.ne.s32.totalorder %s340, %s341
      %p352 = scmp.eq.s32.totalorder %s40, 0
      %p353 = por %p351, %p352
      %p354 = scmp.ne.s32.totalorder %s340, %s341
      %p355 = scmp.eq.s32.totalorder %s41, 1
      %p356 = por %p354, %p355
      %p358 = scmp.ne.s32.totalorder %s341, %s357
      %p359 = scmp.eq.s32.totalorder %s41, 0
      %p360 = por %p358, %p359
      %s361 = ssub.s32 %s35, %s42
      %p362 = scmp.eq.s32.totalorder %s361, 0
      %s364 = sadd.s32 %s363, 1
      %s365 = scalar_select %p362, %s363, %s364
      %p368 = pneg %p362
      %p369 = scmp.eq.s32.totalorder %s35, 1
      %p370 = por %p368, %p369
      %p371 = scmp.ne.s32.totalorder %s363, %s366
      %p372 = scmp.eq.s32.totalorder %s35, 0
      %p373 = por %p371, %p372
      %p374 = scmp.ne.s32.totalorder %s363, %s366
      %p375 = scmp.eq.s32.totalorder %s40, 1
      %p376 = por %p374, %p375
      %p377 = scmp.ne.s32.totalorder %s366, %s367
      %p378 = scmp.eq.s32.totalorder %s40, 0
      %p379 = por %p377, %p378
      %p380 = scmp.ne.s32.totalorder %s366, %s367
      %p381 = scmp.eq.s32.totalorder %s41, 1
      %p382 = por %p380, %p381
      %p384 = scmp.ne.s32.totalorder %s367, %s383
      %p385 = scmp.eq.s32.totalorder %s41, 0
      %p386 = por %p384, %p385
      %s387 = ssub.s32 %s35, %s42
      %p388 = scmp.eq.s32.totalorder %s387, 0
      %s390 = sadd.s32 %s389, 1
      %s391 = scalar_select %p388, %s389, %s390
      %p394 = pneg %p388
      %p395 = scmp.eq.s32.totalorder %s35, 1
      %p396 = por %p394, %p395
      %p397 = scmp.ne.s32.totalorder %s389, %s392
      %p398 = scmp.eq.s32.totalorder %s35, 0
      %p399 = por %p397, %p398
      %p400 = scmp.ne.s32.totalorder %s389, %s392
      %p401 = scmp.eq.s32.totalorder %s40, 1
      %p402 = por %p400, %p401
      %p403 = scmp.ne.s32.totalorder %s392, %s393
      %p404 = scmp.eq.s32.totalorder %s40, 0
      %p405 = por %p403, %p404
      %p406 = scmp.ne.s32.totalorder %s392, %s393
      %p407 = scmp.eq.s32.totalorder %s41, 1
      %p408 = por %p406, %p407
      %p410 = scmp.ne.s32.totalorder %s393, %s409
      %p411 = scmp.eq.s32.totalorder %s41, 0
      %p412 = por %p410, %p411
      %s413 = ssub.s32 %s35, %s42
      %p414 = scmp.eq.s32.totalorder %s413, 0
      %s416 = sadd.s32 %s415, 1
      %s417 = scalar_select %p414, %s415, %s416
      %p420 = pneg %p414
      %p421 = scmp.eq.s32.totalorder %s35, 1
      %p422 = por %p420, %p421
      %p423 = scmp.ne.s32.totalorder %s415, %s418
      %p424 = scmp.eq.s32.totalorder %s35, 0
      %p425 = por %p423, %p424
      %p426 = scmp.ne.s32.totalorder %s415, %s418
      %p427 = scmp.eq.s32.totalorder %s40, 1
      %p428 = por %p426, %p427
      %p429 = scmp.ne.s32.totalorder %s418, %s419
      %p430 = scmp.eq.s32.totalorder %s40, 0
      %p431 = por %p429, %p430
      %p432 = scmp.ne.s32.totalorder %s418, %s419
      %p433 = scmp.eq.s32.totalorder %s41, 1
      %p434 = por %p432, %p433
      %p436 = scmp.ne.s32.totalorder %s419, %s435
      %p437 = scmp.eq.s32.totalorder %s41, 0
      %p438 = por %p436, %p437
      %s440 = sadd.s32 %s439, 1
      %p443 = scmp.eq.s32.totalorder %s35, 1
      %p444 = scmp.ne.s32.totalorder %s439, %s441
      %p445 = scmp.eq.s32.totalorder %s35, 0
      %p446 = por %p444, %p445
      %p447 = scmp.ne.s32.totalorder %s439, %s441
      %p448 = scmp.eq.s32.totalorder %s40, 1
      %p449 = por %p447, %p448
      %p450 = scmp.ne.s32.totalorder %s441, %s442
      %p451 = scmp.eq.s32.totalorder %s40, 0
      %p452 = por %p450, %p451
      %p453 = scmp.ne.s32.totalorder %s441, %s442
      %p454 = scmp.eq.s32.totalorder %s41, 1
      %p455 = por %p453, %p454
      %p457 = scmp.ne.s32.totalorder %s442, %s456
      %p458 = scmp.eq.s32.totalorder %s41, 0
      %p459 = por %p457, %p458
      %s461 = sadd.s32 %s460, 1
      %p464 = scmp.eq.s32.totalorder %s35, 1
      %p465 = scmp.ne.s32.totalorder %s460, %s462
      %p466 = scmp.eq.s32.totalorder %s35, 0
      %p467 = por %p465, %p466
      %p468 = scmp.ne.s32.totalorder %s460, %s462
      %p469 = scmp.eq.s32.totalorder %s40, 1
      %p470 = por %p468, %p469
      %p471 = scmp.ne.s32.totalorder %s462, %s463
      %p472 = scmp.eq.s32.totalorder %s40, 0
      %p473 = por %p471, %p472
      %p474 = scmp.ne.s32.totalorder %s462, %s463
      %p475 = scmp.eq.s32.totalorder %s41, 1
      %p476 = por %p474, %p475
      %p478 = scmp.ne.s32.totalorder %s463, %s477
      %p479 = scmp.eq.s32.totalorder %s41, 0
      %p480 = por %p478, %p479
      %s482 = sadd.s32 %s481, 1
      %p485 = scmp.eq.s32.totalorder %s35, 1
      %p486 = scmp.ne.s32.totalorder %s481, %s483
      %p487 = scmp.eq.s32.totalorder %s35, 0
      %p488 = por %p486, %p487
      %p489 = scmp.ne.s32.totalorder %s481, %s483
      %p490 = scmp.eq.s32.totalorder %s40, 1
      %p491 = por %p489, %p490
      %p492 = scmp.ne.s32.totalorder %s483, %s484
      %p493 = scmp.eq.s32.totalorder %s40, 0
      %p494 = por %p492, %p493
      %p495 = scmp.ne.s32.totalorder %s483, %s484
      %p496 = scmp.eq.s32.totalorder %s41, 1
      %p497 = por %p495, %p496
      %p499 = scmp.ne.s32.totalorder %s484, %s498
      %p500 = scmp.eq.s32.totalorder %s41, 0
      %p501 = por %p499, %p500
      %s503 = sadd.s32 %s502, 1
      %p506 = scmp.eq.s32.totalorder %s35, 1
      %p507 = scmp.ne.s32.totalorder %s502, %s504
      %p508 = scmp.eq.s32.totalorder %s35, 0
      %p509 = por %p507, %p508
      %p510 = scmp.ne.s32.totalorder %s502, %s504
      %p511 = scmp.eq.s32.totalorder %s40, 1
      %p512 = por %p510, %p511
      %p513 = scmp.ne.s32.totalorder %s504, %s505
      %p514 = scmp.eq.s32.totalorder %s40, 0
      %p515 = por %p513, %p514
      %p516 = scmp.ne.s32.totalorder %s504, %s505
      %p517 = scmp.eq.s32.totalorder %s41, 1
      %p518 = por %p516, %p517
      %p520 = scmp.ne.s32.totalorder %s505, %s519
      %p521 = scmp.eq.s32.totalorder %s41, 0
      %p522 = por %p520, %p521
      %s524 = sadd.s32 %s523, 1
      %p527 = scmp.eq.s32.totalorder %s35, 1
      %p528 = scmp.ne.s32.totalorder %s523, %s525
      %p529 = scmp.eq.s32.totalorder %s35, 0
      %p530 = por %p528, %p529
      %p531 = scmp.ne.s32.totalorder %s523, %s525
      %p532 = scmp.eq.s32.totalorder %s40, 1
      %p533 = por %p531, %p532
      %p534 = scmp.ne.s32.totalorder %s525, %s526
      %p535 = scmp.eq.s32.totalorder %s40, 0
      %p536 = por %p534, %p535
      %p537 = scmp.ne.s32.totalorder %s525, %s526
      %p538 = scmp.eq.s32.totalorder %s41, 1
      %p539 = por %p537, %p538
      %p541 = scmp.ne.s32.totalorder %s526, %s540
      %p542 = scmp.eq.s32.totalorder %s41, 0
      %p543 = por %p541, %p542
      %p544 = scmp.le.s32.totalorder 1, %s35
      %p545 = scmp.lt.s32.totalorder %s35, 3
      %p546 = pnand %p544, %p545
      %p547 = pneg %p546
      // Predicated region
      $region9: #{tpu_custom_call.1} parent=5 // pred_check
        _
      $region10: #{tpu_custom_call.1} parent=5 // pred_check_branch
        %549 = sbr.rel (%p546) target = $region12
      $region11: #{tpu_custom_call.1} parent=5 // pred_region
        %s550 = ssub.s32 %s35, 1
        // Predicated region
        $region13: #{tpu_custom_call.1} parent=11 // pred_check
          %p551 = pneg %p56
        $region14: #{tpu_custom_call.1} parent=11 // pred_check_branch
          %553 = sbr.rel (%p551) target = $region16
        $region15: #{tpu_custom_call.1} parent=11 // pred_region
          %555 = vsyncadd [#allocation4], 0
          %s556 = sshll.u32 %s0, 4
          %s557 = int_to_ptr.hbm [resolvable:$true] %s556
          %s558 = sshll.u32 [#allocation3], 4
          %s559 = int_to_ptr.vmem [resolvable:$true] %s558
          %564 = dma.hbm_to_vmem [thread:$0]  %s557, 256, %s559, [#allocation4], 128, 128, 8
        $region16: #{tpu_custom_call.1} parent=11 // pred_fallthru
          _
        // Predicated region
        $region17: #{tpu_custom_call.1} parent=11 // pred_check
          %p565 = pneg %p77
        $region18: #{tpu_custom_call.1} parent=11 // pred_check_branch
          %567 = sbr.rel (%p565) target = $region20
        $region19: #{tpu_custom_call.1} parent=11 // pred_region
          _
        $region20: #{tpu_custom_call.1} parent=11 // pred_fallthru
          _
        // Predicated region
        $region21: #{tpu_custom_call.1} parent=11 // pred_check
          %p568 = pneg %p98
        $region22: #{tpu_custom_call.1} parent=11 // pred_check_branch
          %570 = sbr.rel (%p568) target = $region24
        $region23: #{tpu_custom_call.1} parent=11 // pred_region
          %572 = vsyncadd [#allocation7], 0
          %s574 = sshll.u32 %s2, 4
          %s575 = int_to_ptr.hbm [resolvable:$true] %s574
          %s576 = sshll.u32 [#allocation6], 4
          %s577 = int_to_ptr.vmem [resolvable:$true] %s576
          %579 = dma.hbm_to_vmem [thread:$0]  %s575, 16, %s577, [#allocation7]
        $region24: #{tpu_custom_call.1} parent=11 // pred_fallthru
          _
        // Predicated region
        $region25: #{tpu_custom_call.1} parent=11 // pred_check
          %p580 = pneg %p119
        $region26: #{tpu_custom_call.1} parent=11 // pred_check_branch
          %582 = sbr.rel (%p580) target = $region28
        $region27: #{tpu_custom_call.1} parent=11 // pred_region
          %584 = vsyncadd [#allocation7], 0
          %s586 = sshll.u32 %s3, 4
          %s587 = int_to_ptr.hbm [resolvable:$true] %s586
          %s588 = sshll.u32 [#allocation8], 4
          %s589 = int_to_ptr.vmem [resolvable:$true] %s588
          %591 = dma.hbm_to_vmem [thread:$0]  %s587, 16, %s589, [#allocation7]
        $region28: #{tpu_custom_call.1} parent=11 // pred_fallthru
          _
        // Predicated region
        $region29: #{tpu_custom_call.1} parent=11 // pred_check
          %p592 = pneg %p452
        $region30: #{tpu_custom_call.1} parent=11 // pred_check_branch
          %594 = sbr.rel (%p592) target = $region32
        $region31: #{tpu_custom_call.1} parent=11 // pred_region
          %596 = vsyncadd [#allocation13], 0
          %s597 = sshll.u32 %s16, 4
          %s598 = int_to_ptr.hbm [resolvable:$true] %s597
          %s599 = sshll.u32 [#allocation14], 4
          %s600 = int_to_ptr.vmem [resolvable:$true] %s599
          %605 = dma.hbm_to_vmem [thread:$0]  %s598, 512, %s600, [#allocation13], 128, 128, 8
        $region32: #{tpu_custom_call.1} parent=11 // pred_fallthru
          _
        // Predicated region
        $region33: #{tpu_custom_call.1} parent=11 // pred_check
          %p606 = pneg %p473
        $region34: #{tpu_custom_call.1} parent=11 // pred_check_branch
          %608 = sbr.rel (%p606) target = $region36
        $region35: #{tpu_custom_call.1} parent=11 // pred_region
          _
        $region36: #{tpu_custom_call.1} parent=11 // pred_fallthru
          _
        // Predicated region
        $region37: #{tpu_custom_call.1} parent=11 // pred_check
          %p609 = pneg %p494
        $region38: #{tpu_custom_call.1} parent=11 // pred_check_branch
          %611 = sbr.rel (%p609) target = $region40
        $region39: #{tpu_custom_call.1} parent=11 // pred_region
          _
        $region40: #{tpu_custom_call.1} parent=11 // pred_fallthru
          _
        // Predicated region
        $region41: #{tpu_custom_call.1} parent=11 // pred_check
          %p612 = pneg %p515
        $region42: #{tpu_custom_call.1} parent=11 // pred_check_branch
          %614 = sbr.rel (%p612) target = $region44
        $region43: #{tpu_custom_call.1} parent=11 // pred_region
          _
        $region44: #{tpu_custom_call.1} parent=11 // pred_fallthru
          _
      $region12: #{tpu_custom_call.1} parent=5 // pred_fallthru
        _
      %p615 = scmp.lt.s32.totalorder %s35, 2
      // Predicated region
      $region45: #{tpu_custom_call.1} parent=5 // pred_check
        %p616 = pneg %p615
      $region46: #{tpu_custom_call.1} parent=5 // pred_check_branch
        %618 = sbr.rel (%p616) target = $region48
      $region47: #{tpu_custom_call.1} parent=5 // pred_region
        // Predicated region
        $region49: #{tpu_custom_call.1} parent=47 // pred_check
          %p619 = pneg %p139
        $region50: #{tpu_custom_call.1} parent=47 // pred_check_branch
          %621 = sbr.rel (%p619) target = $region52
        $region51: #{tpu_custom_call.1} parent=47 // pred_region
          %p622 = scmp.lt.s32.totalorder %s35, 1
          %s623 = scalar_select %p622, %s35, 1
          %s624 = smul.addr %s623, 4
          %s625 = smul.addr %s624, 4
          %s626 = scalar_lea.vmem %s4, %s625
        $region52: #{tpu_custom_call.1} parent=47 // pred_fallthru
          _
        // Predicated region
        $region53: #{tpu_custom_call.1} parent=47 // pred_check
          %p627 = pneg %p165
        $region54: #{tpu_custom_call.1} parent=47 // pred_check_branch
          %629 = sbr.rel (%p627) target = $region56
        $region55: #{tpu_custom_call.1} parent=47 // pred_region
          %p630 = scmp.lt.s32.totalorder %s35, 1
          %s631 = scalar_select %p630, %s35, 1
          %s632 = scalar_lea.vmem %s5, %s631
        $region56: #{tpu_custom_call.1} parent=47 // pred_fallthru
          _
        // Predicated region
        $region57: #{tpu_custom_call.1} parent=47 // pred_check
          %p633 = pneg %p191
        $region58: #{tpu_custom_call.1} parent=47 // pred_check_branch
          %635 = sbr.rel (%p633) target = $region60
        $region59: #{tpu_custom_call.1} parent=47 // pred_region
          %p636 = scmp.lt.s32.totalorder %s35, 1
          %s637 = scalar_select %p636, %s35, 1
          %s638 = smul.addr %s637, 4
          %s639 = smul.addr %s638, 4
          %s640 = scalar_lea.vmem %s6, %s639
        $region60: #{tpu_custom_call.1} parent=47 // pred_fallthru
          _
        // Predicated region
        $region61: #{tpu_custom_call.1} parent=47 // pred_check
          %p641 = pneg %p217
        $region62: #{tpu_custom_call.1} parent=47 // pred_check_branch
          %643 = sbr.rel (%p641) target = $region64
        $region63: #{tpu_custom_call.1} parent=47 // pred_region
          %p644 = scmp.lt.s32.totalorder %s35, 1
          %s645 = scalar_select %p644, %s35, 1
          %s646 = scalar_lea.vmem %s7, %s645
        $region64: #{tpu_custom_call.1} parent=47 // pred_fallthru
          _
        // Predicated region
        $region65: #{tpu_custom_call.1} parent=47 // pred_check
          %p647 = pneg %p243
        $region66: #{tpu_custom_call.1} parent=47 // pred_check_branch
          %649 = sbr.rel (%p647) target = $region68
        $region67: #{tpu_custom_call.1} parent=47 // pred_region
          %p650 = scmp.lt.s32.totalorder %s35, 1
          %s651 = scalar_select %p650, %s35, 1
          %s652 = scalar_lea.vmem %s8, %s651
        $region68: #{tpu_custom_call.1} parent=47 // pred_fallthru
          _
        // Predicated region
        $region69: #{tpu_custom_call.1} parent=47 // pred_check
          %p653 = pneg %p269
        $region70: #{tpu_custom_call.1} parent=47 // pred_check_branch
          %655 = sbr.rel (%p653) target = $region72
        $region71: #{tpu_custom_call.1} parent=47 // pred_region
          %p656 = scmp.lt.s32.totalorder %s35, 1
          %s657 = scalar_select %p656, %s35, 1
          %s658 = scalar_lea.vmem %s9, %s657
        $region72: #{tpu_custom_call.1} parent=47 // pred_fallthru
          _
        // Predicated region
        $region73: #{tpu_custom_call.1} parent=47 // pred_check
          %p659 = pneg %p295
        $region74: #{tpu_custom_call.1} parent=47 // pred_check_branch
          %661 = sbr.rel (%p659) target = $region76
        $region75: #{tpu_custom_call.1} parent=47 // pred_region
          %p662 = scmp.lt.s32.totalorder %s35, 1
          %s663 = scalar_select %p662, %s35, 1
          %s664 = smul.addr %s663, 4
          %s665 = smul.addr %s664, 4
          %s666 = scalar_lea.vmem %s10, %s665
        $region76: #{tpu_custom_call.1} parent=47 // pred_fallthru
          _
        // Predicated region
        $region77: #{tpu_custom_call.1} parent=47 // pred_check
          %p667 = pneg %p321
        $region78: #{tpu_custom_call.1} parent=47 // pred_check_branch
          %669 = sbr.rel (%p667) target = $region80
        $region79: #{tpu_custom_call.1} parent=47 // pred_region
          %p670 = scmp.lt.s32.totalorder %s35, 1
          %s671 = scalar_select %p670, %s35, 1
          %s672 = scalar_lea.vmem %s11, %s671
        $region80: #{tpu_custom_call.1} parent=47 // pred_fallthru
          _
        // Predicated region
        $region81: #{tpu_custom_call.1} parent=47 // pred_check
          %p673 = pneg %p347
        $region82: #{tpu_custom_call.1} parent=47 // pred_check_branch
          %675 = sbr.rel (%p673) target = $region84
        $region83: #{tpu_custom_call.1} parent=47 // pred_region
          %p676 = scmp.lt.s32.totalorder %s35, 1
          %s677 = scalar_select %p676, %s35, 1
          %s678 = smul.addr %s677, 8
          %s679 = smul.addr %s678, 4
          %s680 = scalar_lea.vmem %s12, %s679
        $region84: #{tpu_custom_call.1} parent=47 // pred_fallthru
          _
        // Predicated region
        $region85: #{tpu_custom_call.1} parent=47 // pred_check
          %p681 = pneg %p373
        $region86: #{tpu_custom_call.1} parent=47 // pred_check_branch
          %683 = sbr.rel (%p681) target = $region88
        $region87: #{tpu_custom_call.1} parent=47 // pred_region
          %s684 = sand.u32 %s35, 1
          %s685 = scalar_lea.sflag [#allocation10], %s684
          %s686 = sand.u32 %s363, 1
          %s687 = scalar_lea.vmem [#allocation9], %s686
          %689 = vsyncadd %s685, 0
          %s690 = scalar_lea.hbm %s13, %s35
          %s692 = sshll.u32 %s690, 4
          %s693 = int_to_ptr.hbm [resolvable:$true] %s692
          %s694 = sshll.u32 %s687, 4
          %s695 = int_to_ptr.vmem [resolvable:$true] %s694
          %697 = dma.hbm_to_vmem [thread:$0]  %s693, 16, %s695, %s685
        $region88: #{tpu_custom_call.1} parent=47 // pred_fallthru
          _
        // Predicated region
        $region89: #{tpu_custom_call.1} parent=47 // pred_check
          %p698 = pneg %p399
        $region90: #{tpu_custom_call.1} parent=47 // pred_check_branch
          %700 = sbr.rel (%p698) target = $region92
        $region91: #{tpu_custom_call.1} parent=47 // pred_region
          %s701 = sand.u32 %s35, 1
          %s702 = scalar_lea.sflag [#allocation10], %s701
          %s703 = sand.u32 %s389, 1
          %s704 = scalar_lea.vmem [#allocation11], %s703
          %706 = vsyncadd %s702, 0
          %s707 = scalar_lea.hbm %s14, %s35
          %s709 = sshll.u32 %s707, 4
          %s710 = int_to_ptr.hbm [resolvable:$true] %s709
          %s711 = sshll.u32 %s704, 4
          %s712 = int_to_ptr.vmem [resolvable:$true] %s711
          %714 = dma.hbm_to_vmem [thread:$0]  %s710, 16, %s712, %s702
        $region92: #{tpu_custom_call.1} parent=47 // pred_fallthru
          _
        // Predicated region
        $region93: #{tpu_custom_call.1} parent=47 // pred_check
          %p715 = pneg %p425
        $region94: #{tpu_custom_call.1} parent=47 // pred_check_branch
          %717 = sbr.rel (%p715) target = $region96
        $region95: #{tpu_custom_call.1} parent=47 // pred_region
          %s718 = sand.u32 %s35, 1
          %s719 = scalar_lea.sflag [#allocation13], %s718
          %s720 = sand.u32 %s415, 1
          %s721 = scalar_lea.vmem [#allocation12], %s720
          %723 = vsyncadd %s719, 0
          %s724 = scalar_lea.hbm %s15, %s35
          %s726 = sshll.u32 %s724, 4
          %s727 = int_to_ptr.hbm [resolvable:$true] %s726
          %s728 = sshll.u32 %s721, 4
          %s729 = int_to_ptr.vmem [resolvable:$true] %s728
          %731 = dma.hbm_to_vmem [thread:$0]  %s727, 16, %s729, %s719
        $region96: #{tpu_custom_call.1} parent=47 // pred_fallthru
          _
      $region48: #{tpu_custom_call.1} parent=5 // pred_fallthru
        _
      %p732 = scmp.le.s32.totalorder 1, %s35
      %p733 = scmp.lt.s32.totalorder %s35, 3
      %p734 = pnand %p732, %p733
      %p735 = pneg %p734
      // Predicated region
      $region97: #{tpu_custom_call.1} parent=5 // pred_check
        _
      $region98: #{tpu_custom_call.1} parent=5 // pred_check_branch
        %737 = sbr.rel (%p734) target = $region100
      $region99: #{tpu_custom_call.1} parent=5 // pred_region
        %s738 = ssub.s32 %s35, 1
        // Predicated region
        $region101: #{tpu_custom_call.1} parent=99 // pred_check
          %p739 = pneg %p56
        $region102: #{tpu_custom_call.1} parent=99 // pred_check_branch
          %741 = sbr.rel (%p739) target = $region104
        $region103: #{tpu_custom_call.1} parent=99 // pred_region
          %743 = dma.done [#allocation4], 256
        $region104: #{tpu_custom_call.1} parent=99 // pred_fallthru
          _
        // Predicated region
        $region105: #{tpu_custom_call.1} parent=99 // pred_check
          %p744 = pneg %p98
        $region106: #{tpu_custom_call.1} parent=99 // pred_check_branch
          %746 = sbr.rel (%p744) target = $region108
        $region107: #{tpu_custom_call.1} parent=99 // pred_region
          %748 = dma.done [#allocation7], 16
        $region108: #{tpu_custom_call.1} parent=99 // pred_fallthru
          _
        // Predicated region
        $region109: #{tpu_custom_call.1} parent=99 // pred_check
          %p749 = pneg %p119
        $region110: #{tpu_custom_call.1} parent=99 // pred_check_branch
          %751 = sbr.rel (%p749) target = $region112
        $region111: #{tpu_custom_call.1} parent=99 // pred_region
          %753 = dma.done [#allocation7], 16
        $region112: #{tpu_custom_call.1} parent=99 // pred_fallthru
          _
        %s754 = sand.u32 %s40, 1
        %s755 = scalar_lea.sflag [#allocation10], %s754
        %s756 = sand.u32 %s366, 1
        %s757 = scalar_lea.vmem [#allocation9], %s756
        // Predicated region
        $region113: #{tpu_custom_call.1} parent=99 // pred_check
          %p758 = pneg %p379
        $region114: #{tpu_custom_call.1} parent=99 // pred_check_branch
          %760 = sbr.rel (%p758) target = $region116
        $region115: #{tpu_custom_call.1} parent=99 // pred_region
          %762 = dma.done %s755, 16
        $region116: #{tpu_custom_call.1} parent=99 // pred_fallthru
          _
        %s763 = sand.u32 %s40, 1
        %s764 = scalar_lea.sflag [#allocation10], %s763
        %s765 = sand.u32 %s392, 1
        %s766 = scalar_lea.vmem [#allocation11], %s765
        // Predicated region
        $region117: #{tpu_custom_call.1} parent=99 // pred_check
          %p767 = pneg %p405
        $region118: #{tpu_custom_call.1} parent=99 // pred_check_branch
          %769 = sbr.rel (%p767) target = $region120
        $region119: #{tpu_custom_call.1} parent=99 // pred_region
          %771 = dma.done %s764, 16
        $region120: #{tpu_custom_call.1} parent=99 // pred_fallthru
          _
        %s772 = sand.u32 %s40, 1
        %s773 = scalar_lea.sflag [#allocation13], %s772
        %s774 = sand.u32 %s418, 1
        %s775 = scalar_lea.vmem [#allocation12], %s774
        // Predicated region
        $region121: #{tpu_custom_call.1} parent=99 // pred_check
          %p776 = pneg %p431
        $region122: #{tpu_custom_call.1} parent=99 // pred_check_branch
          %778 = sbr.rel (%p776) target = $region124
        $region123: #{tpu_custom_call.1} parent=99 // pred_region
          %780 = dma.done %s773, 16
        $region124: #{tpu_custom_call.1} parent=99 // pred_fallthru
          _
        // Predicated region
        $region125: #{tpu_custom_call.1} parent=99 // pred_check
          %p781 = pneg %p452
        $region126: #{tpu_custom_call.1} parent=99 // pred_check_branch
          %783 = sbr.rel (%p781) target = $region128
        $region127: #{tpu_custom_call.1} parent=99 // pred_region
          %785 = dma.done [#allocation13], 512
        $region128: #{tpu_custom_call.1} parent=99 // pred_fallthru
          _
        %p786 = pneg %p56
        %p787 = pneg %p53
        %p788 = pneg %p77
        %p789 = pneg %p74
        %p790 = pneg %p98
        %p791 = pneg %p95
        %p792 = pneg %p119
        %p793 = pneg %p116
        %p794 = scmp.lt.s32.totalorder %s40, 1
        %s795 = scalar_select %p794, %s40, 1
        %s796 = smul.addr %s795, 4
        %s797 = smul.addr %s796, 4
        %s798 = scalar_lea.vmem %s4, %s797
        %p799 = pneg %p145
        %p800 = pneg %p142
        %p801 = scmp.lt.s32.totalorder %s40, 1
        %s802 = scalar_select %p801, %s40, 1
        %s803 = scalar_lea.vmem %s5, %s802
        %p804 = pneg %p171
        %p805 = pneg %p168
        %p806 = scmp.lt.s32.totalorder %s40, 1
        %s807 = scalar_select %p806, %s40, 1
        %s808 = smul.addr %s807, 4
        %s809 = smul.addr %s808, 4
        %s810 = scalar_lea.vmem %s6, %s809
        %p811 = pneg %p197
        %p812 = pneg %p194
        %p813 = scmp.lt.s32.totalorder %s40, 1
        %s814 = scalar_select %p813, %s40, 1
        %s815 = scalar_lea.vmem %s7, %s814
        %p816 = pneg %p223
        %p817 = pneg %p220
        %p818 = scmp.lt.s32.totalorder %s40, 1
        %s819 = scalar_select %p818, %s40, 1
        %s820 = scalar_lea.vmem %s8, %s819
        %p821 = pneg %p249
        %p822 = pneg %p246
        %p823 = scmp.lt.s32.totalorder %s40, 1
        %s824 = scalar_select %p823, %s40, 1
        %s825 = scalar_lea.vmem %s9, %s824
        %p826 = pneg %p275
        %p827 = pneg %p272
        %p828 = scmp.lt.s32.totalorder %s40, 1
        %s829 = scalar_select %p828, %s40, 1
        %s830 = smul.addr %s829, 4
        %s831 = smul.addr %s830, 4
        %s832 = scalar_lea.vmem %s10, %s831
        %p833 = pneg %p301
        %p834 = pneg %p298
        %p835 = scmp.lt.s32.totalorder %s40, 1
        %s836 = scalar_select %p835, %s40, 1
        %s837 = scalar_lea.vmem %s11, %s836
        %p838 = pneg %p327
        %p839 = pneg %p324
        %p840 = scmp.lt.s32.totalorder %s40, 1
        %s841 = scalar_select %p840, %s40, 1
        %s842 = smul.addr %s841, 8
        %s843 = smul.addr %s842, 4
        %s844 = scalar_lea.vmem %s12, %s843
        %p845 = pneg %p353
        %p846 = pneg %p350
        %s847 = sand.u32 %s40, 1
        %s848 = scalar_lea.sflag [#allocation10], %s847
        %s849 = sand.u32 %s366, 1
        %s850 = scalar_lea.vmem [#allocation9], %s849
        %p851 = pneg %p379
        %p852 = pneg %p376
        %s853 = sand.u32 %s40, 1
        %s854 = scalar_lea.sflag [#allocation10], %s853
        %s855 = sand.u32 %s392, 1
        %s856 = scalar_lea.vmem [#allocation11], %s855
        %p857 = pneg %p405
        %p858 = pneg %p402
        %s859 = sand.u32 %s40, 1
        %s860 = scalar_lea.sflag [#allocation13], %s859
        %s861 = sand.u32 %s418, 1
        %s862 = scalar_lea.vmem [#allocation12], %s861
        %p863 = pneg %p431
        %p864 = pneg %p428
        %p865 = pneg %p452
        %p866 = pneg %p449
        %p867 = pneg %p473
        %p868 = pneg %p470
        %p869 = pneg %p494
        %p870 = pneg %p491
        %p871 = pneg %p515
        %p872 = pneg %p512
        %p873 = pneg %p536
        %p874 = pneg %p533
        %p875 = scmp.lt.s32.totalorder %s40, 1
        %s876 = scalar_select %p875, %s40, 1
        %s877 = smul.addr %s876, 4
        %s878 = smul.addr %s877, 4
        %s879 = scalar_lea.vmem %s4, %s878
        %p880 = scmp.lt.s32.totalorder %s40, 1
        %s881 = scalar_select %p880, %s40, 1
        %s882 = scalar_lea.vmem %s5, %s881
        %p883 = scmp.lt.s32.totalorder %s40, 1
        %s884 = scalar_select %p883, %s40, 1
        %s885 = smul.addr %s884, 4
        %s886 = smul.addr %s885, 4
        %s887 = scalar_lea.vmem %s6, %s886
        %p888 = scmp.lt.s32.totalorder %s40, 1
        %s889 = scalar_select %p888, %s40, 1
        %s890 = scalar_lea.vmem %s7, %s889
        %p891 = scmp.lt.s32.totalorder %s40, 1
        %s892 = scalar_select %p891, %s40, 1
        %s893 = scalar_lea.vmem %s8, %s892
        %p894 = scmp.lt.s32.totalorder %s40, 1
        %s895 = scalar_select %p894, %s40, 1
        %s896 = scalar_lea.vmem %s9, %s895
        %p897 = scmp.lt.s32.totalorder %s40, 1
        %s898 = scalar_select %p897, %s40, 1
        %s899 = smul.addr %s898, 4
        %s900 = smul.addr %s899, 4
        %s901 = scalar_lea.vmem %s10, %s900
        %p902 = scmp.lt.s32.totalorder %s40, 1
        %s903 = scalar_select %p902, %s40, 1
        %s904 = scalar_lea.vmem %s11, %s903
        %p905 = scmp.lt.s32.totalorder %s40, 1
        %s906 = scalar_select %p905, %s40, 1
        %s907 = smul.addr %s906, 8
        %s908 = smul.addr %s907, 4
        %s909 = scalar_lea.vmem %s12, %s908
        %p911 = scmp.eq.s32.totalorder %s40, 0
        // Predicated region
        $region129: #{tpu_custom_call.1} parent=99 // pred_check
          %p912 = pneg %p911
        $region130: #{tpu_custom_call.1} parent=99 // pred_check_branch
          %914 = sbr.rel (%p912) target = $region132
        $region131: #{tpu_custom_call.1} parent=99 // pred_region
          %v915 = vld [vmem:[#allocation3] sm:$0xff]
          %v916 = vld [vmem:[#allocation3 + $0x8] sm:$0xff]
          %v917 = vld [vmem:[#allocation6] sm:$0x1]
          %v918 = vld [vmem:[#allocation8] sm:$0x1]
          %vm919 = vcmask 261120
          %v920 = vsel %vm919, %v915, 0.0
          %921 = vadd.xlane.f32.xlu0 %v920
          %v922 = vpop.xlane.xlu0 %921
          %v923 = vsel %vm919, %v916, 0.0
          %924 = vadd.xlane.f32.xlu0 %v923
          %v925 = vpop.xlane.xlu0 %924
          %v926 = vrcp.pop 32.0
          %v927 = vmul.f32 32.0, %v926
          %v928 = vsub.f32 1.0, %v927
          %v929 = vmul.f32 %v926, %v928
          %v930 = vadd.f32 %v926, %v929
          %vm931 = vweird.f32 %v926
          %v932 = vsel %vm931, %v926, %v930
          %v933 = vmul.f32 %v922, %v932
          %v934 = vmul.f32 %v925, %v932
          %v935 = vsub.f32 %v915, %v933
          %v936 = vsub.f32 %v916, %v934
          %v937 = vmul.f32 %v935, %v935
          %v938 = vmul.f32 %v936, %v936
          %v939 = vsel %vm919, %v937, 0.0
          %940 = vadd.xlane.f32.xlu0 %v939
          %v941 = vpop.xlane.xlu0 %940
          %v942 = vsel %vm919, %v938, 0.0
          %943 = vadd.xlane.f32.xlu0 %v942
          %v944 = vpop.xlane.xlu0 %943
          %v945 = vmul.f32 %v941, %v932
          %v946 = vmul.f32 %v944, %v932
          %v947 = vadd.f32 %v945, 1e-12
          %v948 = vadd.f32 %v946, 1e-12
          %v949 = vrsqrt.pop %v947
          %v950 = vmul.f32 %v949, %v947
          %v951 = vmul.f32 %v950, %v949
          %v952 = vmul.f32 0.5, %v951
          %v953 = vsub.f32 1.5, %v952
          %v954 = vmul.f32 %v949, %v953
          %vm955 = vweird.f32 %v947
          %vm956 = vweird.f32 %v949
          %vm957 = vmor %vm955, %vm956
          %v958 = vsel %vm957, %v949, %v954
          %v959 = vrsqrt.pop %v948
          %v960 = vmul.f32 %v959, %v948
          %v961 = vmul.f32 %v960, %v959
          %v962 = vmul.f32 0.5, %v961
          %v963 = vsub.f32 1.5, %v962
          %v964 = vmul.f32 %v959, %v963
          %vm965 = vweird.f32 %v948
          %vm966 = vweird.f32 %v959
          %vm967 = vmor %vm965, %vm966
          %v968 = vsel %vm967, %v959, %v964
          %v969 = vmul.f32 %v935, %v958
          %v970 = vmul.f32 %v936, %v968
          %v972 = vperm.slane %v917, 0
          %v974 = vmul.f32 %v969, %v972
          %v975 = vmul.f32 %v970, %v972
          %v977 = vperm.slane %v918, 0
          %v979 = vadd.f32 %v974, %v977
          %v980 = vadd.f32 %v975, %v977
          %981 = vst.msk [vmem:[#allocation2] sm:$0xff] %vm919, %v979
          %982 = vst.msk [vmem:[#allocation2 + $0x8] sm:$0xff] %vm919, %v980
        $region132: #{tpu_custom_call.1} parent=99 // pred_fallthru
          _
        %v983 = vld [vmem:[#allocation2] sm:$0xff]
        %v984 = vld [vmem:[#allocation2 + $0x8] sm:$0xff]
        %v985 = vld [vmem:[%s1] sm:$0x3]
        %v986 = vpack.c.bf16 %v984, %v983
        %v987 = vld [vmem:[%s879] sm:$0xf]
        %v988 = vld [vmem:[%s879 + $0x4] sm:$0xf]
        %v989 = vld [vmem:[%s879 + $0x8] sm:$0xf]
        %v990 = vld [vmem:[%s879 + $0xc] sm:$0xf]
        %v991 = vld [vmem:[%s882] sm:$0x1]
        %v993 = vperm.slane %v991, 0
        %v999 = vunpack.c.l.b16 %v987
        %v1000 = vunpack.c.l.b16 %v988
        %v1001 = vunpack.c.l.b16 %v989
        %v1002 = vunpack.c.l.b16 %v990
        %v1003 = vpack.c.b16 %v1000, %v999
        %v1004 = vpack.c.b16 %v1002, %v1001
        %vm1007 = vcmask 261120
        %v1009 = vsel %vm1007, %v986, 0
        %1011 = vmatpush.bf16.msra.mxu0 0
        %1012 = vmatpush.bf16.msra.mxu0 0
        %1013 = vmatpush.bf16.msra.mxu0 0
        %1014 = vmatpush.bf16.msra.mxu0 0
        %1015 = vmatpush.bf16.msra.mxu0 0
        %1016 = vmatpush.bf16.msra.mxu0 0
        %1017 = vmatpush.bf16.msra.mxu0 %v1004
        %1018 = vmatpush.bf16.msra.mxu0 %v1003
        %1019 = vmatmul.bf16.gmra.mxu0 %v1009
        %v1020 = vpop.f32.mrf.mxu0
        %v1021 = vadd.f32 %v993, %v1020
        %v1022 = vpop.f32.mrf.mxu0
        %v1023 = vadd.f32 %v993, %v1022
        %1024 = vdwg.mxu0
        %v1025 = vperm.slane %v985, 0
        %1027 = vrot.lane.b32.xlu0 %v1021, 96
        %v1028 = vpop.permute.xlu0 %1027
        %vm1029 = vcmask 130048
        %v1030 = vsel %vm1029, %v1021, 0
        %v1032 = vsel %vm1029, %v1028, 0
        %1034 = vmatpush.xpose.msra.mxu0 0.0
        %1035 = vmatpush.xpose.msra.mxu0 0.0
        %1036 = vmatpush.xpose.msra.mxu0 0.0
        %1037 = vmatpush.xpose.msra.mxu0 0.0
        %1038 = vmatpush.xpose.msra.mxu0 0.0
        %1039 = vmatpush.xpose.msra.mxu0 0.0
        %1040 = vmatpush.xpose.msra.mxu0 0.0
        %1041 = vmatpush.xpose.msra.mxu0 0.0
        %1042 = vmatpush.xpose.msra.mxu0 0.0
        %1043 = vmatpush.xpose.msra.mxu0 0.0
        %1044 = vmatpush.xpose.msra.mxu0 0.0
        %1045 = vmatpush.xpose.msra.mxu0 0.0
        %1046 = vmatpush.xpose.msra.mxu0 0.0
        %1047 = vmatpush.xpose.msra.mxu0 0.0
        %1048 = vmatpush.xpose.msra.mxu0 0.0
        %1049 = vmatpush.xpose.msra.mxu0 %v1032
        %1050 = vmatmul.f32.gmra.mxu0 %v1030
        %v1051 = vpop.f32.mrf.mxu0
        %v1052 = vadd.f32 %v1025, %v1051
        %1053 = vdwg.mxu0
        %vm1054 = vcmask 64512
        %v1055 = vsel %vm1054, %v1052, -inf
        %1056 = vmax.xlane.f32.xlu0 %v1055
        %v1057 = vpop.xlane.xlu0 %1056
        %v1058 = vsub.f32 %v1052, %v1057
        %v1059 = vmul.f32 %v1058, 1.442695
        %v1060 = vpow.pop %v1059
        %v1061 = vsel %vm1054, %v1060, 0.0
        %1062 = vadd.xlane.f32.xlu0 %v1061
        %v1063 = vpop.xlane.xlu0 %1062
        %v1064 = vrcp.pop %v1063
        %v1065 = vmul.f32 %v1060, %v1064
        %1066 = vrot.lane.b32.xlu0 %v1021, 64
        %v1067 = vpop.permute.xlu0 %1066
        %v1070 = vsel %vm1054, %v1065, 0
        %1072 = vmatpush.msra.mxu0 0.0
        %1073 = vmatpush.msra.mxu0 0.0
        %1074 = vmatpush.msra.mxu0 0.0
        %1075 = vmatpush.msra.mxu0 0.0
        %1076 = vmatpush.msra.mxu0 0.0
        %1077 = vmatpush.msra.mxu0 0.0
        %1078 = vmatpush.msra.mxu0 0.0
        %1079 = vmatpush.msra.mxu0 0.0
        %1080 = vmatpush.msra.mxu0 0.0
        %1081 = vmatpush.msra.mxu0 0.0
        %1082 = vmatpush.msra.mxu0 0.0
        %1083 = vmatpush.msra.mxu0 0.0
        %1084 = vmatpush.msra.mxu0 0.0
        %1085 = vmatpush.msra.mxu0 0.0
        %1086 = vmatpush.msra.mxu0 0.0
        %1087 = vmatpush.msra.mxu0 %v1067
        %1088 = vmatmul.f32.gmra.mxu0 %v1070
        %v1089 = vpop.f32.mrf.mxu0
        %v1090 = vadd.f32 0.0, %v1089
        %1091 = vdwg.mxu0
        %1092 = vrot.lane.b32.xlu0 %v1021, 112
        %v1093 = vpop.permute.xlu0 %1092
        %1094 = vrot.lane.b32.xlu0 %v1021, 80
        %v1095 = vpop.permute.xlu0 %1094
        %v1096 = vsel %vm1029, %v1093, 0
        %v1098 = vsel %vm1029, %v1095, 0
        %1100 = vmatpush.xpose.msra.mxu0 0.0
        %1101 = vmatpush.xpose.msra.mxu0 0.0
        %1102 = vmatpush.xpose.msra.mxu0 0.0
        %1103 = vmatpush.xpose.msra.mxu0 0.0
        %1104 = vmatpush.xpose.msra.mxu0 0.0
        %1105 = vmatpush.xpose.msra.mxu0 0.0
        %1106 = vmatpush.xpose.msra.mxu0 0.0
        %1107 = vmatpush.xpose.msra.mxu0 0.0
        %1108 = vmatpush.xpose.msra.mxu0 0.0
        %1109 = vmatpush.xpose.msra.mxu0 0.0
        %1110 = vmatpush.xpose.msra.mxu0 0.0
        %1111 = vmatpush.xpose.msra.mxu0 0.0
        %1112 = vmatpush.xpose.msra.mxu0 0.0
        %1113 = vmatpush.xpose.msra.mxu0 0.0
        %1114 = vmatpush.xpose.msra.mxu0 0.0
        %1115 = vmatpush.xpose.msra.mxu0 %v1098
        %1116 = vmatmul.f32.gmra.mxu0 %v1096
        %v1117 = vpop.f32.mrf.mxu0
        %v1118 = vadd.f32 %v1025, %v1117
        %1119 = vdwg.mxu0
        %v1120 = vsel %vm1054, %v1118, -inf
        %1121 = vmax.xlane.f32.xlu0 %v1120
        %v1122 = vpop.xlane.xlu0 %1121
        %v1123 = vsub.f32 %v1118, %v1122
        %v1124 = vmul.f32 %v1123, 1.442695
        %v1125 = vpow.pop %v1124
        %v1126 = vsel %vm1054, %v1125, 0.0
        %1127 = vadd.xlane.f32.xlu0 %v1126
        %v1128 = vpop.xlane.xlu0 %1127
        %v1129 = vrcp.pop %v1128
        %v1130 = vmul.f32 %v1125, %v1129
        %1131 = vrot.lane.b32.xlu0 %v1021, 48
        %v1132 = vpop.permute.xlu0 %1131
        %v1135 = vsel %vm1054, %v1130, 0
        %1137 = vmatpush.msra.mxu0 0.0
        %1138 = vmatpush.msra.mxu0 0.0
        %1139 = vmatpush.msra.mxu0 0.0
        %1140 = vmatpush.msra.mxu0 0.0
        %1141 = vmatpush.msra.mxu0 0.0
        %1142 = vmatpush.msra.mxu0 0.0
        %1143 = vmatpush.msra.mxu0 0.0
        %1144 = vmatpush.msra.mxu0 0.0
        %1145 = vmatpush.msra.mxu0 0.0
        %1146 = vmatpush.msra.mxu0 0.0
        %1147 = vmatpush.msra.mxu0 0.0
        %1148 = vmatpush.msra.mxu0 0.0
        %1149 = vmatpush.msra.mxu0 0.0
        %1150 = vmatpush.msra.mxu0 0.0
        %1151 = vmatpush.msra.mxu0 0.0
        %1152 = vmatpush.msra.mxu0 %v1132
        %1153 = vmatmul.f32.gmra.mxu0 %v1135
        %v1154 = vpop.f32.mrf.mxu0
        %v1155 = vadd.f32 0.0, %v1154
        %1156 = vdwg.mxu0
        %1158 = vrot.lane.b32.xlu0 %v1155, 16
        %v1159 = vpop.permute.xlu0 %1158
        %v1161 = vsel %vm1029, %v1090, %v1159
        %v1162 = vperm.slane %v985, 1
        %1164 = vrot.lane.b32.xlu0 %v1023, 96
        %v1165 = vpop.permute.xlu0 %1164
        %v1166 = vsel %vm1029, %v1023, 0
        %v1168 = vsel %vm1029, %v1165, 0
        %1170 = vmatpush.xpose.msra.mxu0 0.0
        %1171 = vmatpush.xpose.msra.mxu0 0.0
        %1172 = vmatpush.xpose.msra.mxu0 0.0
        %1173 = vmatpush.xpose.msra.mxu0 0.0
        %1174 = vmatpush.xpose.msra.mxu0 0.0
        %1175 = vmatpush.xpose.msra.mxu0 0.0
        %1176 = vmatpush.xpose.msra.mxu0 0.0
        %1177 = vmatpush.xpose.msra.mxu0 0.0
        %1178 = vmatpush.xpose.msra.mxu0 0.0
        %1179 = vmatpush.xpose.msra.mxu0 0.0
        %1180 = vmatpush.xpose.msra.mxu0 0.0
        %1181 = vmatpush.xpose.msra.mxu0 0.0
        %1182 = vmatpush.xpose.msra.mxu0 0.0
        %1183 = vmatpush.xpose.msra.mxu0 0.0
        %1184 = vmatpush.xpose.msra.mxu0 0.0
        %1185 = vmatpush.xpose.msra.mxu0 %v1168
        %1186 = vmatmul.f32.gmra.mxu0 %v1166
        %v1187 = vpop.f32.mrf.mxu0
        %v1188 = vadd.f32 %v1162, %v1187
        %1189 = vdwg.mxu0
        %v1190 = vsel %vm1054, %v1188, -inf
        %1191 = vmax.xlane.f32.xlu0 %v1190
        %v1192 = vpop.xlane.xlu0 %1191
        %v1193 = vsub.f32 %v1188, %v1192
        %v1194 = vmul.f32 %v1193, 1.442695
        %v1195 = vpow.pop %v1194
        %v1196 = vsel %vm1054, %v1195, 0.0
        %1197 = vadd.xlane.f32.xlu0 %v1196
        %v1198 = vpop.xlane.xlu0 %1197
        %v1199 = vrcp.pop %v1198
        %v1200 = vmul.f32 %v1195, %v1199
        %1201 = vrot.lane.b32.xlu0 %v1023, 64
        %v1202 = vpop.permute.xlu0 %1201
        %v1205 = vsel %vm1054, %v1200, 0
        %1207 = vmatpush.msra.mxu0 0.0
        %1208 = vmatpush.msra.mxu0 0.0
        %1209 = vmatpush.msra.mxu0 0.0
        %1210 = vmatpush.msra.mxu0 0.0
        %1211 = vmatpush.msra.mxu0 0.0
        %1212 = vmatpush.msra.mxu0 0.0
        %1213 = vmatpush.msra.mxu0 0.0
        %1214 = vmatpush.msra.mxu0 0.0
        %1215 = vmatpush.msra.mxu0 0.0
        %1216 = vmatpush.msra.mxu0 0.0
        %1217 = vmatpush.msra.mxu0 0.0
        %1218 = vmatpush.msra.mxu0 0.0
        %1219 = vmatpush.msra.mxu0 0.0
        %1220 = vmatpush.msra.mxu0 0.0
        %1221 = vmatpush.msra.mxu0 0.0
        %1222 = vmatpush.msra.mxu0 %v1202
        %1223 = vmatmul.f32.gmra.mxu0 %v1205
        %v1224 = vpop.f32.mrf.mxu0
        %v1225 = vadd.f32 0.0, %v1224
        %1226 = vdwg.mxu0
        %1227 = vrot.lane.b32.xlu0 %v1023, 112
        %v1228 = vpop.permute.xlu0 %1227
        %1229 = vrot.lane.b32.xlu0 %v1023, 80
        %v1230 = vpop.permute.xlu0 %1229
        %v1231 = vsel %vm1029, %v1228, 0
        %v1233 = vsel %vm1029, %v1230, 0
        %1235 = vmatpush.xpose.msra.mxu0 0.0
        %1236 = vmatpush.xpose.msra.mxu0 0.0
        %1237 = vmatpush.xpose.msra.mxu0 0.0
        %1238 = vmatpush.xpose.msra.mxu0 0.0
        %1239 = vmatpush.xpose.msra.mxu0 0.0
        %1240 = vmatpush.xpose.msra.mxu0 0.0
        %1241 = vmatpush.xpose.msra.mxu0 0.0
        %1242 = vmatpush.xpose.msra.mxu0 0.0
        %1243 = vmatpush.xpose.msra.mxu0 0.0
        %1244 = vmatpush.xpose.msra.mxu0 0.0
        %1245 = vmatpush.xpose.msra.mxu0 0.0
        %1246 = vmatpush.xpose.msra.mxu0 0.0
        %1247 = vmatpush.xpose.msra.mxu0 0.0
        %1248 = vmatpush.xpose.msra.mxu0 0.0
        %1249 = vmatpush.xpose.msra.mxu0 0.0
        %1250 = vmatpush.xpose.msra.mxu0 %v1233
        %1251 = vmatmul.f32.gmra.mxu0 %v1231
        %v1252 = vpop.f32.mrf.mxu0
        %v1253 = vadd.f32 %v1162, %v1252
        %1254 = vdwg.mxu0
        %v1255 = vsel %vm1054, %v1253, -inf
        %1256 = vmax.xlane.f32.xlu0 %v1255
        %v1257 = vpop.xlane.xlu0 %1256
        %v1258 = vsub.f32 %v1253, %v1257
        %v1259 = vmul.f32 %v1258, 1.442695
        %v1260 = vpow.pop %v1259
        %v1261 = vsel %vm1054, %v1260, 0.0
        %1262 = vadd.xlane.f32.xlu0 %v1261
        %v1263 = vpop.xlane.xlu0 %1262
        %v1264 = vrcp.pop %v1263
        %v1265 = vmul.f32 %v1260, %v1264
        %1266 = vrot.lane.b32.xlu0 %v1023, 48
        %v1267 = vpop.permute.xlu0 %1266
        %v1270 = vsel %vm1054, %v1265, 0
        %1272 = vmatpush.msra.mxu0 0.0
        %1273 = vmatpush.msra.mxu0 0.0
        %1274 = vmatpush.msra.mxu0 0.0
        %1275 = vmatpush.msra.mxu0 0.0
        %1276 = vmatpush.msra.mxu0 0.0
        %1277 = vmatpush.msra.mxu0 0.0
        %1278 = vmatpush.msra.mxu0 0.0
        %1279 = vmatpush.msra.mxu0 0.0
        %1280 = vmatpush.msra.mxu0 0.0
        %1281 = vmatpush.msra.mxu0 0.0
        %1282 = vmatpush.msra.mxu0 0.0
        %1283 = vmatpush.msra.mxu0 0.0
        %1284 = vmatpush.msra.mxu0 0.0
        %1285 = vmatpush.msra.mxu0 0.0
        %1286 = vmatpush.msra.mxu0 0.0
        %1287 = vmatpush.msra.mxu0 %v1267
        %1288 = vmatmul.f32.gmra.mxu0 %v1270
        %v1289 = vpop.f32.mrf.mxu0
        %v1290 = vadd.f32 0.0, %v1289
        %1291 = vdwg.mxu0
        %1293 = vrot.lane.b32.xlu0 %v1290, 16
        %v1294 = vpop.permute.xlu0 %1293
        %v1296 = vsel %vm1029, %v1225, %v1294
        %v1297 = vpack.c.bf16 %v1296, %v1161
        %v1298 = vld [vmem:[%s887] sm:$0xf]
        %v1299 = vld [vmem:[%s887 + $0x4] sm:$0xf]
        %v1300 = vld [vmem:[%s887 + $0x8] sm:$0xf]
        %v1301 = vld [vmem:[%s887 + $0xc] sm:$0xf]
        %v1302 = vld [vmem:[%s890] sm:$0x1]
        %v1304 = vperm.slane %v1302, 0
        %v1310 = vunpack.c.l.b16 %v1298
        %v1311 = vunpack.c.l.b16 %v1299
        %v1312 = vunpack.c.l.b16 %v1300
        %v1313 = vunpack.c.l.b16 %v1301
        %v1314 = vpack.c.b16 %v1311, %v1310
        %v1315 = vpack.c.b16 %v1313, %v1312
        %v1319 = vsel %vm1007, %v1297, 0
        %1321 = vmatpush.bf16.msra.mxu0 0
        %1322 = vmatpush.bf16.msra.mxu0 0
        %1323 = vmatpush.bf16.msra.mxu0 0
        %1324 = vmatpush.bf16.msra.mxu0 0
        %1325 = vmatpush.bf16.msra.mxu0 0
        %1326 = vmatpush.bf16.msra.mxu0 0
        %1327 = vmatpush.bf16.msra.mxu0 %v1315
        %1328 = vmatpush.bf16.msra.mxu0 %v1314
        %1329 = vmatmul.bf16.gmra.mxu0 %v1319
        %v1330 = vpop.f32.mrf.mxu0
        %v1331 = vadd.f32 %v1304, %v1330
        %v1332 = vpop.f32.mrf.mxu0
        %v1333 = vadd.f32 %v1304, %v1332
        %1334 = vdwg.mxu0
        %v1335 = vadd.f32 %v1331, %v983
        %v1336 = vadd.f32 %v1333, %v984
        %v1337 = vld [vmem:[%s893] sm:$0x1]
        %v1338 = vld [vmem:[%s896] sm:$0x1]
        %v1339 = vsel %vm1007, %v1335, 0.0
        %1340 = vadd.xlane.f32.xlu0 %v1339
        %v1341 = vpop.xlane.xlu0 %1340
        %v1342 = vsel %vm1007, %v1336, 0.0
        %1343 = vadd.xlane.f32.xlu0 %v1342
        %v1344 = vpop.xlane.xlu0 %1343
        %v1345 = vrcp.pop 32.0
        %v1346 = vmul.f32 32.0, %v1345
        %v1347 = vsub.f32 1.0, %v1346
        %v1348 = vmul.f32 %v1345, %v1347
        %v1349 = vadd.f32 %v1345, %v1348
        %vm1350 = vweird.f32 %v1345
        %v1351 = vsel %vm1350, %v1345, %v1349
        %v1352 = vmul.f32 %v1341, %v1351
        %v1353 = vmul.f32 %v1344, %v1351
        %v1354 = vsub.f32 %v1335, %v1352
        %v1355 = vsub.f32 %v1336, %v1353
        %v1356 = vmul.f32 %v1354, %v1354
        %v1357 = vmul.f32 %v1355, %v1355
        %v1358 = vsel %vm1007, %v1356, 0.0
        %1359 = vadd.xlane.f32.xlu0 %v1358
        %v1360 = vpop.xlane.xlu0 %1359
        %v1361 = vsel %vm1007, %v1357, 0.0
        %1362 = vadd.xlane.f32.xlu0 %v1361
        %v1363 = vpop.xlane.xlu0 %1362
        %v1364 = vmul.f32 %v1360, %v1351
        %v1365 = vmul.f32 %v1363, %v1351
        %v1366 = vadd.f32 %v1364, 1e-12
        %v1367 = vadd.f32 %v1365, 1e-12
        %v1368 = vrsqrt.pop %v1366
        %v1369 = vmul.f32 %v1368, %v1366
        %v1370 = vmul.f32 %v1369, %v1368
        %v1371 = vmul.f32 0.5, %v1370
        %v1372 = vsub.f32 1.5, %v1371
        %v1373 = vmul.f32 %v1368, %v1372
        %vm1374 = vweird.f32 %v1366
        %vm1375 = vweird.f32 %v1368
        %vm1376 = vmor %vm1374, %vm1375
        %v1377 = vsel %vm1376, %v1368, %v1373
        %v1378 = vrsqrt.pop %v1367
        %v1379 = vmul.f32 %v1378, %v1367
        %v1380 = vmul.f32 %v1379, %v1378
        %v1381 = vmul.f32 0.5, %v1380
        %v1382 = vsub.f32 1.5, %v1381
        %v1383 = vmul.f32 %v1378, %v1382
        %vm1384 = vweird.f32 %v1367
        %vm1385 = vweird.f32 %v1378
        %vm1386 = vmor %vm1384, %vm1385
        %v1387 = vsel %vm1386, %v1378, %v1383
        %v1388 = vmul.f32 %v1354, %v1377
        %v1389 = vmul.f32 %v1355, %v1387
        %v1391 = vperm.slane %v1337, 0
        %v1393 = vmul.f32 %v1388, %v1391
        %v1394 = vmul.f32 %v1389, %v1391
        %v1396 = vperm.slane %v1338, 0
        %v1398 = vadd.f32 %v1393, %v1396
        %v1399 = vadd.f32 %v1394, %v1396
        %v1400 = vpack.c.bf16 %v1399, %v1398
        %v1401 = vld [vmem:[%s901] sm:$0xf]
        %v1402 = vld [vmem:[%s901 + $0x4] sm:$0xf]
        %v1403 = vld [vmem:[%s901 + $0x8] sm:$0xf]
        %v1404 = vld [vmem:[%s901 + $0xc] sm:$0xf]
        %v1405 = vld [vmem:[%s904] sm:$0x1]
        %v1407 = vperm.slane %v1405, 0
        %v1413 = vunpack.c.l.b16 %v1401
        %v1414 = vunpack.c.l.b16 %v1402
        %v1415 = vunpack.c.l.b16 %v1403
        %v1416 = vunpack.c.l.b16 %v1404
        %v1417 = vpack.c.b16 %v1414, %v1413
        %v1418 = vpack.c.b16 %v1416, %v1415
        %v1422 = vsel %vm1007, %v1400, 0
        %1424 = vmatpush.bf16.msra.mxu0 0
        %1425 = vmatpush.bf16.msra.mxu0 0
        %1426 = vmatpush.bf16.msra.mxu0 0
        %1427 = vmatpush.bf16.msra.mxu0 0
        %1428 = vmatpush.bf16.msra.mxu0 0
        %1429 = vmatpush.bf16.msra.mxu0 0
        %1430 = vmatpush.bf16.msra.mxu0 %v1418
        %1431 = vmatpush.bf16.msra.mxu0 %v1417
        %1432 = vmatmul.bf16.gmra.mxu0 %v1422
        %v1433 = vpop.f32.mrf.mxu0
        %v1434 = vadd.f32 %v1407, %v1433
        %v1435 = vpop.f32.mrf.mxu0
        %v1436 = vadd.f32 %v1407, %v1435
        %1437 = vdwg.mxu0
        %v1438 = vmul.f32 %v1434, %v1434
        %v1439 = vmul.f32 %v1436, %v1436
        %v1440 = vmul.f32 %v1434, %v1438
        %v1441 = vmul.f32 %v1436, %v1439
        %v1442 = vmul.f32 %v1440, 0.044715
        %v1443 = vmul.f32 %v1441, 0.044715
        %v1444 = vadd.f32 %v1434, %v1442
        %v1445 = vadd.f32 %v1436, %v1443
        %v1446 = vmul.f32 %v1444, 0.7978846
        %v1447 = vmul.f32 %v1445, 0.7978846
        %v1448 = vtanh.pop %v1446
        %v1449 = vtanh.pop %v1447
        %v1450 = vadd.f32 %v1448, 1.0
        %v1451 = vadd.f32 %v1449, 1.0
        %v1452 = vmul.f32 %v1450, 0.5
        %v1453 = vmul.f32 %v1451, 0.5
        %v1454 = vmul.f32 %v1434, %v1452
        %v1455 = vmul.f32 %v1436, %v1453
        %v1456 = vpack.c.bf16 %v1455, %v1454
        %v1457 = vld [vmem:[%s909] sm:$0xf]
        %v1458 = vld [vmem:[%s909 + $0x4] sm:$0xf]
        %v1459 = vld [vmem:[%s909 + $0x8] sm:$0xf]
        %v1460 = vld [vmem:[%s909 + $0xc] sm:$0xf]
        %v1461 = vld [vmem:[%s909 + $0x10] sm:$0xf]
        %v1462 = vld [vmem:[%s909 + $0x14] sm:$0xf]
        %v1463 = vld [vmem:[%s909 + $0x18] sm:$0xf]
        %v1464 = vld [vmem:[%s909 + $0x1c] sm:$0xf]
        %v1465 = vld [vmem:[%s757] sm:$0x1]
        %v1467 = vperm.slane %v1465, 0
        %v1477 = vunpack.c.l.b16 %v1457
        %v1478 = vunpack.c.l.b16 %v1458
        %v1479 = vunpack.c.l.b16 %v1459
        %v1480 = vunpack.c.l.b16 %v1460
        %v1481 = vunpack.c.l.b16 %v1461
        %v1482 = vunpack.c.l.b16 %v1462
        %v1483 = vunpack.c.l.b16 %v1463
        %v1484 = vunpack.c.l.b16 %v1464
        %v1485 = vpack.c.b16 %v1478, %v1477
        %v1486 = vpack.c.b16 %v1480, %v1479
        %v1487 = vpack.c.b16 %v1482, %v1481
        %v1488 = vpack.c.b16 %v1484, %v1483
        %vm1493 = vcmask 523264
        %v1495 = vsel %vm1493, %v1456, 0
        %1497 = vmatpush.bf16.msra.mxu0 0
        %1498 = vmatpush.bf16.msra.mxu0 0
        %1499 = vmatpush.bf16.msra.mxu0 0
        %1500 = vmatpush.bf16.msra.mxu0 0
        %1501 = vmatpush.bf16.msra.mxu0 %v1488
        %1502 = vmatpush.bf16.msra.mxu0 %v1487
        %1503 = vmatpush.bf16.msra.mxu0 %v1486
        %1504 = vmatpush.bf16.msra.mxu0 %v1485
        %1505 = vmatmul.bf16.gmra.mxu0 %v1495
        %v1506 = vpop.f32.mrf.mxu0
        %v1507 = vadd.f32 %v1467, %v1506
        %v1508 = vpop.f32.mrf.mxu0
        %v1509 = vadd.f32 %v1467, %v1508
        %1510 = vdwg.mxu0
        %v1511 = vadd.f32 %v1507, %v1398
        %v1512 = vadd.f32 %v1509, %v1399
        %v1513 = vld [vmem:[%s766] sm:$0x1]
        %v1514 = vld [vmem:[%s775] sm:$0x1]
        %v1515 = vsel %vm1007, %v1511, 0.0
        %1516 = vadd.xlane.f32.xlu0 %v1515
        %v1517 = vpop.xlane.xlu0 %1516
        %v1518 = vsel %vm1007, %v1512, 0.0
        %1519 = vadd.xlane.f32.xlu0 %v1518
        %v1520 = vpop.xlane.xlu0 %1519
        %v1521 = vmul.f32 %v1517, %v1351
        %v1522 = vmul.f32 %v1520, %v1351
        %v1523 = vsub.f32 %v1511, %v1521
        %v1524 = vsub.f32 %v1512, %v1522
        %v1525 = vmul.f32 %v1523, %v1523
        %v1526 = vmul.f32 %v1524, %v1524
        %v1527 = vsel %vm1007, %v1525, 0.0
        %1528 = vadd.xlane.f32.xlu0 %v1527
        %v1529 = vpop.xlane.xlu0 %1528
        %v1530 = vsel %vm1007, %v1526, 0.0
        %1531 = vadd.xlane.f32.xlu0 %v1530
        %v1532 = vpop.xlane.xlu0 %1531
        %v1533 = vmul.f32 %v1529, %v1351
        %v1534 = vmul.f32 %v1532, %v1351
        %v1535 = vadd.f32 %v1533, 1e-12
        %v1536 = vadd.f32 %v1534, 1e-12
        %v1537 = vrsqrt.pop %v1535
        %v1538 = vmul.f32 %v1537, %v1535
        %v1539 = vmul.f32 %v1538, %v1537
        %v1540 = vmul.f32 0.5, %v1539
        %v1541 = vsub.f32 1.5, %v1540
        %v1542 = vmul.f32 %v1537, %v1541
        %vm1543 = vweird.f32 %v1535
        %vm1544 = vweird.f32 %v1537
        %vm1545 = vmor %vm1543, %vm1544
        %v1546 = vsel %vm1545, %v1537, %v1542
        %v1547 = vrsqrt.pop %v1536
        %v1548 = vmul.f32 %v1547, %v1536
        %v1549 = vmul.f32 %v1548, %v1547
        %v1550 = vmul.f32 0.5, %v1549
        %v1551 = vsub.f32 1.5, %v1550
        %v1552 = vmul.f32 %v1547, %v1551
        %vm1553 = vweird.f32 %v1536
        %vm1554 = vweird.f32 %v1547
        %vm1555 = vmor %vm1553, %vm1554
        %v1556 = vsel %vm1555, %v1547, %v1552
        %v1557 = vmul.f32 %v1523, %v1546
        %v1558 = vmul.f32 %v1524, %v1556
        %v1560 = vperm.slane %v1513, 0
        %v1562 = vmul.f32 %v1557, %v1560
        %v1563 = vmul.f32 %v1558, %v1560
        %v1565 = vperm.slane %v1514, 0
        %v1567 = vadd.f32 %v1562, %v1565
        %v1568 = vadd.f32 %v1563, %v1565
        %1569 = vst.msk [vmem:[#allocation2] sm:$0xff] %vm1007, %v1567
        %1570 = vst.msk [vmem:[#allocation2 + $0x8] sm:$0xff] %vm1007, %v1568
        %p1571 = scmp.eq.s32.totalorder %s40, 1
        // Predicated region
        $region133: #{tpu_custom_call.1} parent=99 // pred_check
          %p1572 = pneg %p1571
        $region134: #{tpu_custom_call.1} parent=99 // pred_check_branch
          %1574 = sbr.rel (%p1572) target = $region136
        $region135: #{tpu_custom_call.1} parent=99 // pred_region
          %v1576 = vrot.slane %v1568, 7
          %vm1578 = vcmask 1040384
          %v1579 = vsel %vm1578, %v1567, %v1576
          %v1580 = vld [vmem:[#allocation14] sm:$0xff]
          %v1581 = vld [vmem:[#allocation14 + $0x8] sm:$0xff]
          %v1582 = vld [vmem:[#allocation14 + $0x10] sm:$0xff]
          %v1583 = vld [vmem:[#allocation14 + $0x18] sm:$0xff]
          %v1584 = vld [vmem:[%s17] sm:$0x1]
          %v1586 = vperm.slane %v1584, 0
          %v1589 = vsel %vm1007, %v1579, 0
          %1591 = vmatpush.msra.mxu0 0.0
          %1592 = vmatpush.msra.mxu0 0.0
          %1593 = vmatpush.msra.mxu0 0.0
          %1594 = vmatpush.msra.mxu0 0.0
          %1595 = vmatpush.msra.mxu0 0.0
          %1596 = vmatpush.msra.mxu0 0.0
          %1597 = vmatpush.msra.mxu0 0.0
          %1598 = vmatpush.msra.mxu0 0.0
          %1599 = vmatpush.msra.mxu0 0.0
          %1600 = vmatpush.msra.mxu0 0.0
          %1601 = vmatpush.msra.mxu0 0.0
          %1602 = vmatpush.msra.mxu0 0.0
          %1603 = vmatpush.msra.mxu0 %v1583
          %1604 = vmatpush.msra.mxu0 %v1582
          %1605 = vmatpush.msra.mxu0 %v1581
          %1606 = vmatpush.msra.mxu0 %v1580
          %1607 = vmatmul.f32.gmra.mxu0 %v1589
          %v1608 = vpop.f32.mrf.mxu0
          %v1609 = vadd.f32 %v1586, %v1608
          %1610 = vdwg.mxu0
          %v1611 = vtanh.pop %v1609
          %v1612 = vld [vmem:[%s18] sm:$0xff]
          %v1613 = vld [vmem:[%s18 + $0x8] sm:$0xff]
          %v1614 = vld [vmem:[%s18 + $0x10] sm:$0xff]
          %v1615 = vld [vmem:[%s18 + $0x18] sm:$0xff]
          %v1616 = vld [vmem:[%s19] sm:$0x1]
          %v1618 = vperm.slane %v1616, 0
          %v1621 = vsel %vm1007, %v1611, 0
          %1623 = vmatpush.msra.mxu0 0.0
          %1624 = vmatpush.msra.mxu0 0.0
          %1625 = vmatpush.msra.mxu0 0.0
          %1626 = vmatpush.msra.mxu0 0.0
          %1627 = vmatpush.msra.mxu0 0.0
          %1628 = vmatpush.msra.mxu0 0.0
          %1629 = vmatpush.msra.mxu0 0.0
          %1630 = vmatpush.msra.mxu0 0.0
          %1631 = vmatpush.msra.mxu0 0.0
          %1632 = vmatpush.msra.mxu0 0.0
          %1633 = vmatpush.msra.mxu0 0.0
          %1634 = vmatpush.msra.mxu0 0.0
          %1635 = vmatpush.msra.mxu0 %v1615
          %1636 = vmatpush.msra.mxu0 %v1614
          %1637 = vmatpush.msra.mxu0 %v1613
          %1638 = vmatpush.msra.mxu0 %v1612
          %1639 = vmatmul.f32.gmra.mxu0 %v1621
          %v1640 = vpop.f32.mrf.mxu0
          %v1641 = vadd.f32 %v1618, %v1640
          %1642 = vdwg.mxu0
          %vm1643 = vcmask 9216
          %v1644 = vsel %vm1643, %v1641, -inf
          %1645 = vmax.xlane.f32.xlu0 %v1644
          %v1646 = vpop.xlane.xlu0 %1645
          %v1647 = vsub.f32 %v1641, %v1646
          %v1648 = vmul.f32 %v1647, 1.442695
          %v1649 = vpow.pop %v1648
          %v1650 = vsel %vm1643, %v1649, 0.0
          %1651 = vadd.xlane.f32.xlu0 %v1650
          %v1652 = vpop.xlane.xlu0 %1651
          %v1653 = vrcp.pop %v1652
          %v1654 = vmul.f32 %v1652, %v1653
          %v1655 = vsub.f32 1.0, %v1654
          %v1656 = vmul.f32 %v1653, %v1655
          %v1657 = vadd.f32 %v1653, %v1656
          %vm1658 = vweird.f32 %v1652
          %vm1659 = vweird.f32 %v1653
          %vm1660 = vmor %vm1658, %vm1659
          %v1661 = vsel %vm1660, %v1653, %v1657
          %v1662 = vand.u32 2147483647, %v1652
          %vm1663 = vcmp.eq.f32.partialorder %v1662, 8.507059e+37
          %v1664 = vand.u32 %v1652, 2147483648
          %v1665 = vor.u32 1.1754944e-38, %v1664
          %v1666 = vsel %vm1663, %v1665, %v1661
          %v1667 = vmul.f32 %v1649, %v1666
          %1668 = vst.msk [vmem:[#allocation15] sm:$0x3] %vm1643, %v1667
        $region136: #{tpu_custom_call.1} parent=99 // pred_fallthru
          _
        // Predicated region
        $region137: #{tpu_custom_call.1} parent=99 // pred_check
          %p1669 = pneg %p533
        $region138: #{tpu_custom_call.1} parent=99 // pred_check_branch
          %1671 = sbr.rel (%p1669) target = $region140
        $region139: #{tpu_custom_call.1} parent=99 // pred_region
          %1673 = vsyncadd [#allocation5], 0
          %s1675 = sshll.u32 [#allocation15], 4
          %s1676 = int_to_ptr.vmem [resolvable:$true] %s1675
          %s1677 = sshll.u32 %s20, 4
          %s1678 = int_to_ptr.hbm [resolvable:$true] %s1677
          %1680 = dma.vmem_to_hbm [thread:$0]  %s1676, 32, %s1678, [#allocation5]
        $region140: #{tpu_custom_call.1} parent=99 // pred_fallthru
          _
        // Predicated region
        $region141: #{tpu_custom_call.1} parent=99 // pred_check
          %p1681 = pneg %p533
        $region142: #{tpu_custom_call.1} parent=99 // pred_check_branch
          %1683 = sbr.rel (%p1681) target = $region144
        $region143: #{tpu_custom_call.1} parent=99 // pred_region
          %1685 = dma.done [#allocation5], 32
        $region144: #{tpu_custom_call.1} parent=99 // pred_fallthru
          _
      $region100: #{tpu_custom_call.1} parent=5 // pred_fallthru
        _
      %p1686 = scmp.le.s32.totalorder 2, %s35
      // Predicated region
      $region145: #{tpu_custom_call.1} parent=5 // pred_check
        %p1687 = pneg %p1686
      $region146: #{tpu_custom_call.1} parent=5 // pred_check_branch
        %1689 = sbr.rel (%p1687) target = $region148
      $region147: #{tpu_custom_call.1} parent=5 // pred_region
        %s1690 = ssub.s32 %s35, 2
      $region148: #{tpu_custom_call.1} parent=5 // pred_fallthru
        _
    $region6: #{tpu_custom_call.1} parent=1 // loop_footer
      %s39 = sadd.s32 1, %s35
    $region7: #{tpu_custom_call.1} parent=1 // loop_footer_branch
      %34 = sbr.rel target = $region3
    $region8: #{tpu_custom_call.1} parent=1 // loop_exit
      _
    %1691 = vsyncpa [#allocation4], 1
    %s1692 = scalar_lea.sflag [#allocation4], 1
    %1693 = vsyncpa %s1692, 1
    %1694 = vsyncpa [#allocation7], 1
    %1695 = vsyncpa [#allocation10], 1
    %s1696 = scalar_lea.sflag [#allocation10], 1
    %1697 = vsyncpa %s1696, 1
    %1698 = vsyncpa [#allocation13], 1
    %s1699 = scalar_lea.sflag [#allocation13], 1
    %1700 = vsyncpa %s1699, 1
    %1701 = vsyncpa [#allocation5], 1
    %s1702 = scalar_lea.sflag [#allocation5], 1
    %1703 = vsyncpa %s1702, 1

</llo_original>
